<compile_context>
chip_gen: v5e
topology: v5e:2x2
jax: 0.10.0
libtpu: 0.0.40
codegen_flags: <defaults>
</compile_context>

<pallas_src>
import jax
import jax.numpy as jnp
from jax.experimental import pallas as pl
from jax.experimental.pallas import tpu as pltpu

_EPS = 1e-12                      # matches torch.nn.functional.normalize default eps
_TILE_BYTES_BUDGET = 4 << 20      # ~4 MiB per input tile (in+out double-buffered ≈ 16 MiB)
_MIN_TILE_BYTES = 1 << 20         # keep per-step tiles >= ~1 MiB when splitting a small array
_SMALL_FALLBACK_BYTES = 256 << 10 # below this, XLA fusion beats pallas_call launch overhead
_VMEM_LIMIT_FLOOR = 32 << 20      # safe scoped-VMEM request on v5e/v6e/v7x
_VMEM_HARD_CAP = 56 << 20         # stay under v7x's 64 MiB physical VMEM


def _normalize_rows_kernel(p_ref, o_ref):
    """L2-normalize each row of the (tile_k, d) block."""
    p = p_ref[...].astype(jnp.float32)
    # row-wise sum of squares -> (tile_k, 1)   (XLU cross-lane reduce)
    sq_sum = jnp.sum(p * p, axis=1, keepdims=True)
    # F.normalize: x / max(||x||, eps).  Reciprocal of the tiny (tile_k, 1)
    # denominator (EUP slot), then a broadcast multiply instead of a full divide.
    denom = jnp.maximum(jnp.sqrt(sq_sum), _EPS)
    inv = pl.reciprocal(denom, approx=False)
    o_ref[...] = (p * inv).astype(o_ref.dtype)


def _jnp_normalize(p: jax.Array) -> jax.Array:
    x = p.astype(jnp.float32)
    norm = jnp.sqrt(jnp.sum(x * x, axis=1, keepdims=True))
    return (x / jnp.maximum(norm, _EPS)).astype(p.dtype)


def _sublane(dtype) -> int:
    # f32 -> 8 rows per sublane tile, bf16 -> 16, int8/fp8 -> 32
    return max(8, 32 // jnp.dtype(dtype).itemsize)


def _plan(k: int, d: int, dtype):
    """Returns (tile_k, vmem_limit_bytes), or None when the jnp path is better/safer."""
    itemsize = jnp.dtype(dtype).itemsize
    total_bytes = k * d * itemsize
    if total_bytes < _SMALL_FALLBACK_BYTES:
        return None  # dispatch-dominated: let XLA fuse it

    sub = _sublane(dtype)
    row_bytes = d * itemsize

    if total_bytes <= _TILE_BYTES_BUDGET:
        # Whole matrix fits in one budget tile: 1-4 grid steps of >= ~1 MiB each.
        steps = max(1, min(4, pl.cdiv(total_bytes, _MIN_TILE_BYTES)))
        rows = pl.cdiv(k, steps)
    else:
        rows = max(sub, _TILE_BYTES_BUDGET // row_bytes)

    tile_k = ((rows + sub - 1) // sub) * sub  # sublane-aligned
    if tile_k >= k:
        tile_k = k  # a block dim equal to the full array dim is always legal

    # in-tile + out-tile, double-buffered, plus headroom for compiler scratch.
    needed = 4 * tile_k * row_bytes + (4 << 20)
    if needed > _VMEM_HARD_CAP:
        # TODO(synk): extremely wide d would need feature-dim tiling of the
        # sum-of-squares; fall back to the fused XLA normalize instead.
        return None
    vmem_limit = min(_VMEM_HARD_CAP, max(_VMEM_LIMIT_FLOOR, needed))
    return tile_k, vmem_limit


def normalize_prototypes(prototypes: jax.Array) -> jax.Array:
    """Pallas equivalent of Prototypes.forward(): F.normalize(prototypes, dim=1)."""
    k, d = prototypes.shape
    plan = _plan(k, d, prototypes.dtype)
    if plan is None:
        return _jnp_normalize(prototypes)
    tile_k, vmem_limit = plan

    grid = (pl.cdiv(k, tile_k),)  # ragged last block: OOB reads garbage, writes masked

    return pl.pallas_call(
        _normalize_rows_kernel,
        out_shape=jax.ShapeDtypeStruct((k, d), prototypes.dtype),
        grid_spec=pltpu.PrefetchScalarGridSpec(
            num_scalar_prefetch=0,
            grid=grid,
            in_specs=[pl.BlockSpec((tile_k, d), lambda i: (i, 0))],
            out_specs=pl.BlockSpec((tile_k, d), lambda i: (i, 0)),
        ),
        compiler_params=pltpu.CompilerParams(
            dimension_semantics=("parallel",),
            vmem_limit_bytes=vmem_limit,
        ),
    )(prototypes)


class Prototypes:
    """JAX mirror of the PyTorch module (deterministic randn init)."""

    def __init__(self, k: int, d: int, key: jax.Array):
        # torch.randn(k, d) analogue, deterministic via PRNGKey
        # TODO(synk): gradient flow / optimizer handling stays outside the kernel.
        self.prototypes = jax.random.normal(key, (k, d), dtype=jnp.float32)

    def __call__(self) -> jax.Array:
        return normalize_prototypes(self.prototypes)


def _reference(p: jax.Array) -> jax.Array:
    return p / jnp.maximum(jnp.linalg.norm(p, axis=1, keepdims=True), _EPS)


if __name__ == "__main__":
    key = jax.random.PRNGKey(0)
    k0, k1, k2, k3, k4 = jax.random.split(key, 5)

    # 1) tiny shape from the module spec (k prototypes, hidden d) -> jnp fast path
    module = Prototypes(16, 32, k0)
    out_tiny = jax.block_until_ready(module())
    assert out_tiny.shape == (16, 32)
    assert jnp.allclose(out_tiny, _reference(module.prototypes), atol=1e-6, rtol=1e-6)

    # 2) kernel path, d multiple of 128, non-divisible k -> 2 steps, ragged last block
    p1 = jax.random.normal(k1, (1000, 384), dtype=jnp.float32)
    out1 = jax.block_until_ready(normalize_prototypes(p1))
    assert jnp.allclose(out1, _reference(p1), atol=1e-6, rtol=1e-6)

    # 3) kernel path, d NOT a multiple of 128, multiple grid steps (no pad/slice pass)
    p2 = jax.random.normal(k2, (2048, 200), dtype=jnp.float32)
    out2 = jax.block_until_ready(normalize_prototypes(p2))
    assert out2.shape == (2048, 200)
    assert jnp.allclose(out2, _reference(p2), atol=1e-6, rtol=1e-6)

    # 4) kernel path, d NOT a multiple of 128, single full-extent block
    p3 = jax.random.normal(k3, (1024, 96), dtype=jnp.float32)
    out3 = jax.block_until_ready(normalize_prototypes(p3))
    assert out3.shape == (1024, 96)
    assert jnp.allclose(out3, _reference(p3), atol=1e-6, rtol=1e-6)

    # 5) larger-than-budget matrix -> multiple 4 MiB tiles streamed through VMEM
    p4 = jax.random.normal(k4, (8192, 256), dtype=jnp.float32)
    out4 = jax.block_until_ready(normalize_prototypes(p4))
    assert jnp.allclose(out4, _reference(p4), atol=1e-6, rtol=1e-6)

    print("KERNEL_OK")
</pallas_src>

<mosaic_0001>
module attributes {stable_mosaic.version = 11 : i64} {
  func.func @_normalize_rows_kernel(%arg0: i32, %arg1: memref<504x384xf32, #tpu.memory_space<vmem>>, %arg2: memref<504x384xf32, #tpu.memory_space<vmem>>) attributes {dimension_semantics = [#tpu.dimension_semantics<parallel>], iteration_bounds = array<i64: 2>, scalar_prefetch = 0 : i64, scratch_operands = 0 : i64, tpu.core_type = #tpu.core_type<tc>, window_params = [{transform_indices = @transform_0, window_bounds = array<i64: 504, 384>}, {transform_indices = @transform_1, window_bounds = array<i64: 504, 384>}]} {
    %c0 = arith.constant 0 : index
    %c0_0 = arith.constant 0 : index
    %0 = vector.load %arg1[%c0, %c0_0] : memref<504x384xf32, #tpu.memory_space<vmem>>, vector<504x384xf32>
    %1 = arith.mulf %0, %0 : vector<504x384xf32>
    %cst = arith.constant dense<0.000000e+00> : vector<504xf32>
    %2 = vector.multi_reduction <add>, %1, %cst [1] : vector<504x384xf32> to vector<504xf32>
    %3 = vector.shape_cast %2 : vector<504xf32> to vector<504x1xf32>
    %4 = math.sqrt %3 : vector<504x1xf32>
    %cst_1 = arith.constant 9.99999996E-13 : f32
    %5 = vector.broadcast %cst_1 : f32 to vector<504x1xf32>
    %6 = arith.maximumf %4, %5 : vector<504x1xf32>
    %7 = tpu.reciprocal %6 : vector<504x1xf32> -> vector<504x1xf32>
    %8 = vector.broadcast %7 : vector<504x1xf32> to vector<504x384xf32>
    %9 = arith.mulf %0, %8 : vector<504x384xf32>
    %c0_2 = arith.constant 0 : index
    %c0_3 = arith.constant 0 : index
    %10 = vector.load %arg2[%c0_2, %c0_3] : memref<504x384xf32, #tpu.memory_space<vmem>>, vector<504x384xf32>
    tpu.vector_store %arg2[%c0_2, %c0_3], %9 {strides = array<i32>} : memref<504x384xf32, #tpu.memory_space<vmem>>, vector<504x384xf32>,
    return
  }
  func.func @transform_0(%arg0: i32) -> (i32, i32) {
    %c0_i32 = arith.constant 0 : i32
    %c0_i32_0 = arith.constant 0 : i32
    return %arg0, %c0_i32 : i32, i32
  }
  func.func @transform_1(%arg0: i32) -> (i32, i32) {
    %c0_i32 = arith.constant 0 : i32
    %c0_i32_0 = arith.constant 0 : i32
    return %arg0, %c0_i32 : i32, i32
  }
}

</mosaic_0001>

<llo_original>
// kernel: tpu_custom_call.1
$region0: #{tpu_custom_call.1}
  #allocation0 [shape = 'u32[]', space=smem, size = 0x4, offset = 0x4, fixed_abs, tag = 'smem constant byte address 0x4 - core index']
  #allocation1 [shape = 'u32[72,128]{1,0:T(1,128)}', space=vmem, size = 0x9000, scoped, tag = 'internal scratch']
  %s0 = inlined_call_operand.hbm [shape: f32[1000,384], index: 0, kind: input, shape index: {}]
  %s1 = inlined_call_operand.hbm [shape: f32[1000,384], index: 1, kind: output, shape index: {}]
  %s2 = sld [smem:[#allocation0]]
  $region41: #{tpu_custom_call.1} parent=0
    _
  %s4 = ssub.s32 1, %s2
  %s5 = scalar_select 0, %s4, %s2
  $region1: #{tpu_custom_call.1} parent=0
    #allocation2 [shape = 'u8[1548288]{0}', space=vmem, size = 0x17a000, scoped, tag = 'input window, operand 0']
    #allocation3 [shape = 's32[2]{0}', space=sflag, size = 0x8, scoped, tag = 'scoped memory for tpu_custom_call.1']
    #allocation4 [shape = 's32[2]{0}', space=sflag, size = 0x8, scoped, tag = 'scoped memory for tpu_custom_call.1']
    #allocation5 [shape = 'u8[1548288]{0}', space=vmem, size = 0x17a000, scoped, tag = 'output window, operand 0']
    %6 = vsyncpa [#allocation3], 0
    %s7 = scalar_lea.sflag [#allocation3], 1
    %8 = vsyncpa %s7, 0
    %9 = vsyncpa [#allocation4], 0
    %s10 = scalar_lea.sflag [#allocation4], 1
    %11 = vsyncpa %s10, 0
    loop: start=0, step=1, limit=4
    $region2: #{tpu_custom_call.1} parent=1 // loop_pre_header
      _
    $region3: #{tpu_custom_call.1} parent=1 // loop_header
      %s13 = sphi 0, %s17
      %p14 = scmp.ge.s32.totalorder %s13, 4
      %s23 = sphi 0, %s25
      %s26 = sphi 0, %s23
      %s27 = sphi 0, %s26
      %s43 = sphi 0, %s27
      %s49 = sphi 0, %s51
      %s52 = sphi 0, %s49
      %s53 = sphi 0, %s52
      %s69 = sphi 0, %s53
    $region4: #{tpu_custom_call.1} parent=1 // loop_header_branch
      %16 = sbr.rel (%p14) target = $region8
    $region5: #{tpu_custom_call.1} parent=1 // loop_body
      %s18 = ssub.s32 %s13, 1
      %s19 = ssub.s32 %s13, 2
      %s20 = sadd.s32 %s13, 1
      %s21 = ssub.s32 %s13, %s20
      %p22 = scmp.eq.s32.totalorder %s21, 0
      %s24 = sadd.s32 %s23, 1
      %s25 = scalar_select %p22, %s23, %s24
      %p28 = pneg %p22
      %p29 = scmp.eq.s32.totalorder %s13, 1
      %p30 = por %p28, %p29
      %p31 = scmp.ne.s32.totalorder %s23, %s26
      %p32 = scmp.eq.s32.totalorder %s13, 0
      %p33 = por %p31, %p32
      %p34 = scmp.ne.s32.totalorder %s23, %s26
      %p35 = scmp.eq.s32.totalorder %s18, 1
      %p36 = por %p34, %p35
      %p37 = scmp.ne.s32.totalorder %s26, %s27
      %p38 = scmp.eq.s32.totalorder %s18, 0
      %p39 = por %p37, %p38
      %p40 = scmp.ne.s32.totalorder %s26, %s27
      %p41 = scmp.eq.s32.totalorder %s19, 1
      %p42 = por %p40, %p41
      %p44 = scmp.ne.s32.totalorder %s27, %s43
      %p45 = scmp.eq.s32.totalorder %s19, 0
      %p46 = por %p44, %p45
      %s47 = ssub.s32 %s13, %s20
      %p48 = scmp.eq.s32.totalorder %s47, 0
      %s50 = sadd.s32 %s49, 1
      %s51 = scalar_select %p48, %s49, %s50
      %p54 = pneg %p48
      %p55 = scmp.eq.s32.totalorder %s13, 1
      %p56 = por %p54, %p55
      %p57 = scmp.ne.s32.totalorder %s49, %s52
      %p58 = scmp.eq.s32.totalorder %s13, 0
      %p59 = por %p57, %p58
      %p60 = scmp.ne.s32.totalorder %s49, %s52
      %p61 = scmp.eq.s32.totalorder %s18, 1
      %p62 = por %p60, %p61
      %p63 = scmp.ne.s32.totalorder %s52, %s53
      %p64 = scmp.eq.s32.totalorder %s18, 0
      %p65 = por %p63, %p64
      %p66 = scmp.ne.s32.totalorder %s52, %s53
      %p67 = scmp.eq.s32.totalorder %s19, 1
      %p68 = por %p66, %p67
      %p70 = scmp.ne.s32.totalorder %s53, %s69
      %p71 = scmp.eq.s32.totalorder %s19, 0
      %p72 = por %p70, %p71
      %p73 = scmp.le.s32.totalorder 1, %s13
      %p74 = scmp.lt.s32.totalorder %s13, 3
      %p75 = pnand %p73, %p74
      %p76 = pneg %p75
      // Predicated region
      $region9: #{tpu_custom_call.1} parent=5 // pred_check
        _
      $region10: #{tpu_custom_call.1} parent=5 // pred_check_branch
        %78 = sbr.rel (%p75) target = $region12
      $region11: #{tpu_custom_call.1} parent=5 // pred_region
        %s79 = ssub.s32 %s13, 1
      $region12: #{tpu_custom_call.1} parent=5 // pred_fallthru
        _
      %p80 = scmp.lt.s32.totalorder %s13, 2
      // Predicated region
      $region13: #{tpu_custom_call.1} parent=5 // pred_check
        %p81 = pneg %p80
      $region14: #{tpu_custom_call.1} parent=5 // pred_check_branch
        %83 = sbr.rel (%p81) target = $region16
      $region15: #{tpu_custom_call.1} parent=5 // pred_region
        // Predicated region
        $region17: #{tpu_custom_call.1} parent=15 // pred_check
          %p84 = pneg %p33
        $region18: #{tpu_custom_call.1} parent=15 // pred_check_branch
          %86 = sbr.rel (%p84) target = $region20
        $region19: #{tpu_custom_call.1} parent=15 // pred_region
          %s87 = sand.u32 %s23, 1
          %s88 = scalar_lea.sflag [#allocation3], %s87
          %s89 = sand.u32 %s23, 1
          %s90 = smul.addr %s89, 1512
          %s91 = scalar_lea.vmem [#allocation2], %s90
          %s92 = smul.u32 63, %s13
          %s93 = ssub.s32 125, %s92
          %p94 = scmp.lt.s32.totalorder %s93, 63
          %s95 = scalar_select %p94, %s93, 63
          %s96 = smul.u32 8, %s95
          %s97 = smul.u32 %s96, 3
          %s98 = ssub.s32 1512, %s97
          %s99 = sshll.u32 %s98, 4
          %100 = vsyncadd %s88, %s99
          %p101 = scmp.ne.s32.totalorder 0, %s97
          %s102 = smul.addr %s92, 3
          %s103 = smul.addr %s102, 8
          %s104 = scalar_lea.hbm %s0, %s103
          %s105 = smul.u32 24, %s95
          %s106 = sshll.u32 %s104, 4
          %s107 = int_to_ptr.hbm [resolvable:$true] %s106
          %s108 = sshll.u32 %s91, 4
          %s109 = int_to_ptr.vmem [resolvable:$true] %s108
          %s110 = sshll.u32 %s105, 4
          %114 = dma.hbm_to_vmem [thread:$0]  (%p101), %s107, %s110, %s109, %s88, 384, 384, 24
        $region20: #{tpu_custom_call.1} parent=15 // pred_fallthru
          _
      $region16: #{tpu_custom_call.1} parent=5 // pred_fallthru
        _
      %p115 = scmp.le.s32.totalorder 1, %s13
      %p116 = scmp.lt.s32.totalorder %s13, 3
      %p117 = pnand %p115, %p116
      %p118 = pneg %p117
      // Predicated region
      $region21: #{tpu_custom_call.1} parent=5 // pred_check
        _
      $region22: #{tpu_custom_call.1} parent=5 // pred_check_branch
        %120 = sbr.rel (%p117) target = $region24
      $region23: #{tpu_custom_call.1} parent=5 // pred_region
        %s121 = ssub.s32 %s13, 1
        %s122 = sand.u32 %s26, 1
        %s123 = scalar_lea.sflag [#allocation3], %s122
        %s124 = sand.u32 %s26, 1
        %s125 = smul.addr %s124, 1512
        %s126 = scalar_lea.vmem [#allocation2], %s125
        // Predicated region
        $region25: #{tpu_custom_call.1} parent=23 // pred_check
          %p127 = pneg %p39
        $region26: #{tpu_custom_call.1} parent=23 // pred_check_branch
          %129 = sbr.rel (%p127) target = $region28
        $region27: #{tpu_custom_call.1} parent=23 // pred_region
          %131 = dma.done %s123, 24192
        $region28: #{tpu_custom_call.1} parent=23 // pred_fallthru
          _
        %s132 = sand.u32 %s26, 1
        %s133 = scalar_lea.sflag [#allocation3], %s132
        %s134 = sand.u32 %s26, 1
        %s135 = smul.addr %s134, 1512
        %s136 = scalar_lea.vmem [#allocation2], %s135
        %p137 = pneg %p39
        %p138 = pneg %p36
        %p139 = pneg %p65
        %p140 = pneg %p62
        %s141 = sand.u32 %s52, 1
        %s142 = scalar_lea.sflag [#allocation4], %s141
        %s143 = sand.u32 %s52, 1
        %s144 = smul.addr %s143, 1512
        %s145 = scalar_lea.vmem [#allocation5], %s144
        %s146 = smul.u32 63, %s18
        %s147 = ssub.s32 125, %s146
        %p148 = scmp.lt.s32.totalorder %s147, 63
        %s149 = scalar_select %p148, %s147, 63
        %s150 = smul.u32 8, %s149
        %s151 = smul.u32 %s150, 3
        %s152 = smul.u32 63, %s18
        %s153 = ssub.s32 125, %s152
        %p154 = scmp.lt.s32.totalorder %s153, 63
        %s155 = scalar_select %p154, %s153, 63
        %s156 = smul.u32 8, %s155
        %s157 = smul.u32 %s156, 3
        %v158 = vld [vmem:[%s126] sm:$0xff]
        %v159 = vld [vmem:[%s126 + $0x8] sm:$0xff]
        %v160 = vld [vmem:[%s126 + $0x10] sm:$0xff]
        %v161 = vld [vmem:[%s126 + $0x18] sm:$0xff]
        %v162 = vld [vmem:[%s126 + $0x20] sm:$0xff]
        %v163 = vld [vmem:[%s126 + $0x28] sm:$0xff]
        %v164 = vld [vmem:[%s126 + $0x30] sm:$0xff]
        %v165 = vld [vmem:[%s126 + $0x38] sm:$0xff]
        %v166 = vld [vmem:[%s126 + $0x40] sm:$0xff]
        %v167 = vld [vmem:[%s126 + $0x48] sm:$0xff]
        %v168 = vld [vmem:[%s126 + $0x50] sm:$0xff]
        %v169 = vld [vmem:[%s126 + $0x58] sm:$0xff]
        %v170 = vld [vmem:[%s126 + $0x60] sm:$0xff]
        %v171 = vld [vmem:[%s126 + $0x68] sm:$0xff]
        %v172 = vld [vmem:[%s126 + $0x70] sm:$0xff]
        %v173 = vld [vmem:[%s126 + $0x78] sm:$0xff]
        %v174 = vld [vmem:[%s126 + $0x80] sm:$0xff]
        %v175 = vld [vmem:[%s126 + $0x88] sm:$0xff]
        %v176 = vld [vmem:[%s126 + $0x90] sm:$0xff]
        %v177 = vld [vmem:[%s126 + $0x98] sm:$0xff]
        %v178 = vld [vmem:[%s126 + $0xa0] sm:$0xff]
        %v179 = vld [vmem:[%s126 + $0xa8] sm:$0xff]
        %v180 = vld [vmem:[%s126 + $0xb0] sm:$0xff]
        %v181 = vld [vmem:[%s126 + $0xb8] sm:$0xff]
        %v182 = vld [vmem:[%s126 + $0xc0] sm:$0xff]
        %v183 = vld [vmem:[%s126 + $0xc8] sm:$0xff]
        %v184 = vld [vmem:[%s126 + $0xd0] sm:$0xff]
        %v185 = vld [vmem:[%s126 + $0xd8] sm:$0xff]
        %v186 = vld [vmem:[%s126 + $0xe0] sm:$0xff]
        %v187 = vld [vmem:[%s126 + $0xe8] sm:$0xff]
        %v188 = vld [vmem:[%s126 + $0xf0] sm:$0xff]
        %v189 = vld [vmem:[%s126 + $0xf8] sm:$0xff]
        %v190 = vld [vmem:[%s126 + $0x100] sm:$0xff]
        %v191 = vld [vmem:[%s126 + $0x108] sm:$0xff]
        %v192 = vld [vmem:[%s126 + $0x110] sm:$0xff]
        %v193 = vld [vmem:[%s126 + $0x118] sm:$0xff]
        %v194 = vld [vmem:[%s126 + $0x120] sm:$0xff]
        %v195 = vld [vmem:[%s126 + $0x128] sm:$0xff]
        %v196 = vld [vmem:[%s126 + $0x130] sm:$0xff]
        %v197 = vld [vmem:[%s126 + $0x138] sm:$0xff]
        %v198 = vld [vmem:[%s126 + $0x140] sm:$0xff]
        %v199 = vld [vmem:[%s126 + $0x148] sm:$0xff]
        %v200 = vld [vmem:[%s126 + $0x150] sm:$0xff]
        %v201 = vld [vmem:[%s126 + $0x158] sm:$0xff]
        %v202 = vld [vmem:[%s126 + $0x160] sm:$0xff]
        %v203 = vld [vmem:[%s126 + $0x168] sm:$0xff]
        %v204 = vld [vmem:[%s126 + $0x170] sm:$0xff]
        %v205 = vld [vmem:[%s126 + $0x178] sm:$0xff]
        %v206 = vld [vmem:[%s126 + $0x180] sm:$0xff]
        %v207 = vld [vmem:[%s126 + $0x188] sm:$0xff]
        %v208 = vld [vmem:[%s126 + $0x190] sm:$0xff]
        %v209 = vld [vmem:[%s126 + $0x198] sm:$0xff]
        %v210 = vld [vmem:[%s126 + $0x1a0] sm:$0xff]
        %v211 = vld [vmem:[%s126 + $0x1a8] sm:$0xff]
        %v212 = vld [vmem:[%s126 + $0x1b0] sm:$0xff]
        %v213 = vld [vmem:[%s126 + $0x1b8] sm:$0xff]
        %v214 = vld [vmem:[%s126 + $0x1c0] sm:$0xff]
        %v215 = vld [vmem:[%s126 + $0x1c8] sm:$0xff]
        %v216 = vld [vmem:[%s126 + $0x1d0] sm:$0xff]
        %v217 = vld [vmem:[%s126 + $0x1d8] sm:$0xff]
        %v218 = vld [vmem:[%s126 + $0x1e0] sm:$0xff]
        %v219 = vld [vmem:[%s126 + $0x1e8] sm:$0xff]
        %v220 = vld [vmem:[%s126 + $0x1f0] sm:$0xff]
        %v221 = vld [vmem:[%s126 + $0x1f8] sm:$0xff]
        %v222 = vld [vmem:[%s126 + $0x200] sm:$0xff]
        %v223 = vld [vmem:[%s126 + $0x208] sm:$0xff]
        %v224 = vld [vmem:[%s126 + $0x210] sm:$0xff]
        %v225 = vld [vmem:[%s126 + $0x218] sm:$0xff]
        %v226 = vld [vmem:[%s126 + $0x220] sm:$0xff]
        %v227 = vld [vmem:[%s126 + $0x228] sm:$0xff]
        %v228 = vld [vmem:[%s126 + $0x230] sm:$0xff]
        %v229 = vld [vmem:[%s126 + $0x238] sm:$0xff]
        %v230 = vld [vmem:[%s126 + $0x240] sm:$0xff]
        %v231 = vld [vmem:[%s126 + $0x248] sm:$0xff]
        %v232 = vld [vmem:[%s126 + $0x250] sm:$0xff]
        %v233 = vld [vmem:[%s126 + $0x258] sm:$0xff]
        %v234 = vld [vmem:[%s126 + $0x260] sm:$0xff]
        %v235 = vld [vmem:[%s126 + $0x268] sm:$0xff]
        %v236 = vld [vmem:[%s126 + $0x270] sm:$0xff]
        %v237 = vld [vmem:[%s126 + $0x278] sm:$0xff]
        %v238 = vld [vmem:[%s126 + $0x280] sm:$0xff]
        %v239 = vld [vmem:[%s126 + $0x288] sm:$0xff]
        %v240 = vld [vmem:[%s126 + $0x290] sm:$0xff]
        %v241 = vld [vmem:[%s126 + $0x298] sm:$0xff]
        %v242 = vld [vmem:[%s126 + $0x2a0] sm:$0xff]
        %v243 = vld [vmem:[%s126 + $0x2a8] sm:$0xff]
        %v244 = vld [vmem:[%s126 + $0x2b0] sm:$0xff]
        %v245 = vld [vmem:[%s126 + $0x2b8] sm:$0xff]
        %v246 = vld [vmem:[%s126 + $0x2c0] sm:$0xff]
        %v247 = vld [vmem:[%s126 + $0x2c8] sm:$0xff]
        %v248 = vld [vmem:[%s126 + $0x2d0] sm:$0xff]
        %v249 = vld [vmem:[%s126 + $0x2d8] sm:$0xff]
        %v250 = vld [vmem:[%s126 + $0x2e0] sm:$0xff]
        %v251 = vld [vmem:[%s126 + $0x2e8] sm:$0xff]
        %v252 = vld [vmem:[%s126 + $0x2f0] sm:$0xff]
        %v253 = vld [vmem:[%s126 + $0x2f8] sm:$0xff]
        %v254 = vld [vmem:[%s126 + $0x300] sm:$0xff]
        %v255 = vld [vmem:[%s126 + $0x308] sm:$0xff]
        %v256 = vld [vmem:[%s126 + $0x310] sm:$0xff]
        %v257 = vld [vmem:[%s126 + $0x318] sm:$0xff]
        %v258 = vld [vmem:[%s126 + $0x320] sm:$0xff]
        %v259 = vld [vmem:[%s126 + $0x328] sm:$0xff]
        %v260 = vld [vmem:[%s126 + $0x330] sm:$0xff]
        %v261 = vld [vmem:[%s126 + $0x338] sm:$0xff]
        %v262 = vld [vmem:[%s126 + $0x340] sm:$0xff]
        %v263 = vld [vmem:[%s126 + $0x348] sm:$0xff]
        %v264 = vld [vmem:[%s126 + $0x350] sm:$0xff]
        %v265 = vld [vmem:[%s126 + $0x358] sm:$0xff]
        %v266 = vld [vmem:[%s126 + $0x360] sm:$0xff]
        %v267 = vld [vmem:[%s126 + $0x368] sm:$0xff]
        %v268 = vld [vmem:[%s126 + $0x370] sm:$0xff]
        %v269 = vld [vmem:[%s126 + $0x378] sm:$0xff]
        %v270 = vld [vmem:[%s126 + $0x380] sm:$0xff]
        %v271 = vld [vmem:[%s126 + $0x388] sm:$0xff]
        %v272 = vld [vmem:[%s126 + $0x390] sm:$0xff]
        %v273 = vld [vmem:[%s126 + $0x398] sm:$0xff]
        %v274 = vld [vmem:[%s126 + $0x3a0] sm:$0xff]
        %v275 = vld [vmem:[%s126 + $0x3a8] sm:$0xff]
        %v276 = vld [vmem:[%s126 + $0x3b0] sm:$0xff]
        %v277 = vld [vmem:[%s126 + $0x3b8] sm:$0xff]
        %v278 = vld [vmem:[%s126 + $0x3c0] sm:$0xff]
        %v279 = vld [vmem:[%s126 + $0x3c8] sm:$0xff]
        %v280 = vld [vmem:[%s126 + $0x3d0] sm:$0xff]
        %v281 = vld [vmem:[%s126 + $0x3d8] sm:$0xff]
        %v282 = vld [vmem:[%s126 + $0x3e0] sm:$0xff]
        %v283 = vld [vmem:[%s126 + $0x3e8] sm:$0xff]
        %v284 = vld [vmem:[%s126 + $0x3f0] sm:$0xff]
        %v285 = vld [vmem:[%s126 + $0x3f8] sm:$0xff]
        %v286 = vld [vmem:[%s126 + $0x400] sm:$0xff]
        %v287 = vld [vmem:[%s126 + $0x408] sm:$0xff]
        %v288 = vld [vmem:[%s126 + $0x410] sm:$0xff]
        %v289 = vld [vmem:[%s126 + $0x418] sm:$0xff]
        %v290 = vld [vmem:[%s126 + $0x420] sm:$0xff]
        %v291 = vld [vmem:[%s126 + $0x428] sm:$0xff]
        %v292 = vld [vmem:[%s126 + $0x430] sm:$0xff]
        %v293 = vld [vmem:[%s126 + $0x438] sm:$0xff]
        %v294 = vld [vmem:[%s126 + $0x440] sm:$0xff]
        %v295 = vld [vmem:[%s126 + $0x448] sm:$0xff]
        %v296 = vld [vmem:[%s126 + $0x450] sm:$0xff]
        %v297 = vld [vmem:[%s126 + $0x458] sm:$0xff]
        %v298 = vld [vmem:[%s126 + $0x460] sm:$0xff]
        %v299 = vld [vmem:[%s126 + $0x468] sm:$0xff]
        %v300 = vld [vmem:[%s126 + $0x470] sm:$0xff]
        %v301 = vld [vmem:[%s126 + $0x478] sm:$0xff]
        %v302 = vld [vmem:[%s126 + $0x480] sm:$0xff]
        %v303 = vld [vmem:[%s126 + $0x488] sm:$0xff]
        %v304 = vld [vmem:[%s126 + $0x490] sm:$0xff]
        %v305 = vld [vmem:[%s126 + $0x498] sm:$0xff]
        %v306 = vld [vmem:[%s126 + $0x4a0] sm:$0xff]
        %v307 = vld [vmem:[%s126 + $0x4a8] sm:$0xff]
        %v308 = vld [vmem:[%s126 + $0x4b0] sm:$0xff]
        %v309 = vld [vmem:[%s126 + $0x4b8] sm:$0xff]
        %v310 = vld [vmem:[%s126 + $0x4c0] sm:$0xff]
        %v311 = vld [vmem:[%s126 + $0x4c8] sm:$0xff]
        %v312 = vld [vmem:[%s126 + $0x4d0] sm:$0xff]
        %v313 = vld [vmem:[%s126 + $0x4d8] sm:$0xff]
        %v314 = vld [vmem:[%s126 + $0x4e0] sm:$0xff]
        %v315 = vld [vmem:[%s126 + $0x4e8] sm:$0xff]
        %v316 = vld [vmem:[%s126 + $0x4f0] sm:$0xff]
        %v317 = vld [vmem:[%s126 + $0x4f8] sm:$0xff]
        %v318 = vld [vmem:[%s126 + $0x500] sm:$0xff]
        %v319 = vld [vmem:[%s126 + $0x508] sm:$0xff]
        %v320 = vld [vmem:[%s126 + $0x510] sm:$0xff]
        %v321 = vld [vmem:[%s126 + $0x518] sm:$0xff]
        %v322 = vld [vmem:[%s126 + $0x520] sm:$0xff]
        %v323 = vld [vmem:[%s126 + $0x528] sm:$0xff]
        %v324 = vld [vmem:[%s126 + $0x530] sm:$0xff]
        %v325 = vld [vmem:[%s126 + $0x538] sm:$0xff]
        %v326 = vld [vmem:[%s126 + $0x540] sm:$0xff]
        %v327 = vld [vmem:[%s126 + $0x548] sm:$0xff]
        %v328 = vld [vmem:[%s126 + $0x550] sm:$0xff]
        %v329 = vld [vmem:[%s126 + $0x558] sm:$0xff]
        %v330 = vld [vmem:[%s126 + $0x560] sm:$0xff]
        %v331 = vld [vmem:[%s126 + $0x568] sm:$0xff]
        %v332 = vld [vmem:[%s126 + $0x570] sm:$0xff]
        %v333 = vld [vmem:[%s126 + $0x578] sm:$0xff]
        %v334 = vld [vmem:[%s126 + $0x580] sm:$0xff]
        %v335 = vld [vmem:[%s126 + $0x588] sm:$0xff]
        %v336 = vld [vmem:[%s126 + $0x590] sm:$0xff]
        %v337 = vld [vmem:[%s126 + $0x598] sm:$0xff]
        %v338 = vld [vmem:[%s126 + $0x5a0] sm:$0xff]
        %v339 = vld [vmem:[%s126 + $0x5a8] sm:$0xff]
        %v340 = vld [vmem:[%s126 + $0x5b0] sm:$0xff]
        %v341 = vld [vmem:[%s126 + $0x5b8] sm:$0xff]
        %v342 = vld [vmem:[%s126 + $0x5c0] sm:$0xff]
        %v343 = vld [vmem:[%s126 + $0x5c8] sm:$0xff]
        %v344 = vld [vmem:[%s126 + $0x5d0] sm:$0xff]
        %v345 = vld [vmem:[%s126 + $0x5d8] sm:$0xff]
        %v346 = vld [vmem:[%s126 + $0x5e0] sm:$0xff]
        %v347 = vmul.f32 %v158, %v158
        %v348 = vmul.f32 %v159, %v159
        %v349 = vmul.f32 %v160, %v160
        %v350 = vmul.f32 %v161, %v161
        %v351 = vmul.f32 %v162, %v162
        %v352 = vmul.f32 %v163, %v163
        %v353 = vmul.f32 %v164, %v164
        %v354 = vmul.f32 %v165, %v165
        %v355 = vmul.f32 %v166, %v166
        %v356 = vmul.f32 %v167, %v167
        %v357 = vmul.f32 %v168, %v168
        %v358 = vmul.f32 %v169, %v169
        %v359 = vmul.f32 %v170, %v170
        %v360 = vmul.f32 %v171, %v171
        %v361 = vmul.f32 %v172, %v172
        %v362 = vmul.f32 %v173, %v173
        %v363 = vmul.f32 %v174, %v174
        %v364 = vmul.f32 %v175, %v175
        %v365 = vmul.f32 %v176, %v176
        %v366 = vmul.f32 %v177, %v177
        %v367 = vmul.f32 %v178, %v178
        %v368 = vmul.f32 %v179, %v179
        %v369 = vmul.f32 %v180, %v180
        %v370 = vmul.f32 %v181, %v181
        %v371 = vmul.f32 %v182, %v182
        %v372 = vmul.f32 %v183, %v183
        %v373 = vmul.f32 %v184, %v184
        %v374 = vmul.f32 %v185, %v185
        %v375 = vmul.f32 %v186, %v186
        %v376 = vmul.f32 %v187, %v187
        %v377 = vmul.f32 %v188, %v188
        %v378 = vmul.f32 %v189, %v189
        %v379 = vmul.f32 %v190, %v190
        %v380 = vmul.f32 %v191, %v191
        %v381 = vmul.f32 %v192, %v192
        %v382 = vmul.f32 %v193, %v193
        %v383 = vmul.f32 %v194, %v194
        %v384 = vmul.f32 %v195, %v195
        %v385 = vmul.f32 %v196, %v196
        %v386 = vmul.f32 %v197, %v197
        %v387 = vmul.f32 %v198, %v198
        %v388 = vmul.f32 %v199, %v199
        %v389 = vmul.f32 %v200, %v200
        %v390 = vmul.f32 %v201, %v201
        %v391 = vmul.f32 %v202, %v202
        %v392 = vmul.f32 %v203, %v203
        %v393 = vmul.f32 %v204, %v204
        %v394 = vmul.f32 %v205, %v205
        %v395 = vmul.f32 %v206, %v206
        %v396 = vmul.f32 %v207, %v207
        %v397 = vmul.f32 %v208, %v208
        %v398 = vmul.f32 %v209, %v209
        %v399 = vmul.f32 %v210, %v210
        %v400 = vmul.f32 %v211, %v211
        %v401 = vmul.f32 %v212, %v212
        %v402 = vmul.f32 %v213, %v213
        %v403 = vmul.f32 %v214, %v214
        %v404 = vmul.f32 %v215, %v215
        %v405 = vmul.f32 %v216, %v216
        %v406 = vmul.f32 %v217, %v217
        %v407 = vmul.f32 %v218, %v218
        %v408 = vmul.f32 %v219, %v219
        %v409 = vmul.f32 %v220, %v220
        %v410 = vmul.f32 %v221, %v221
        %v411 = vmul.f32 %v222, %v222
        %v412 = vmul.f32 %v223, %v223
        %v413 = vmul.f32 %v224, %v224
        %v414 = vmul.f32 %v225, %v225
        %v415 = vmul.f32 %v226, %v226
        %v416 = vmul.f32 %v227, %v227
        %v417 = vmul.f32 %v228, %v228
        %v418 = vmul.f32 %v229, %v229
        %v419 = vmul.f32 %v230, %v230
        %v420 = vmul.f32 %v231, %v231
        %v421 = vmul.f32 %v232, %v232
        %v422 = vmul.f32 %v233, %v233
        %v423 = vmul.f32 %v234, %v234
        %v424 = vmul.f32 %v235, %v235
        %v425 = vmul.f32 %v236, %v236
        %v426 = vmul.f32 %v237, %v237
        %v427 = vmul.f32 %v238, %v238
        %v428 = vmul.f32 %v239, %v239
        %v429 = vmul.f32 %v240, %v240
        %v430 = vmul.f32 %v241, %v241
        %v431 = vmul.f32 %v242, %v242
        %v432 = vmul.f32 %v243, %v243
        %v433 = vmul.f32 %v244, %v244
        %v434 = vmul.f32 %v245, %v245
        %v435 = vmul.f32 %v246, %v246
        %v436 = vmul.f32 %v247, %v247
        %v437 = vmul.f32 %v248, %v248
        %v438 = vmul.f32 %v249, %v249
        %v439 = vmul.f32 %v250, %v250
        %v440 = vmul.f32 %v251, %v251
        %v441 = vmul.f32 %v252, %v252
        %v442 = vmul.f32 %v253, %v253
        %v443 = vmul.f32 %v254, %v254
        %v444 = vmul.f32 %v255, %v255
        %v445 = vmul.f32 %v256, %v256
        %v446 = vmul.f32 %v257, %v257
        %v447 = vmul.f32 %v258, %v258
        %v448 = vmul.f32 %v259, %v259
        %v449 = vmul.f32 %v260, %v260
        %v450 = vmul.f32 %v261, %v261
        %v451 = vmul.f32 %v262, %v262
        %v452 = vmul.f32 %v263, %v263
        %v453 = vmul.f32 %v264, %v264
        %v454 = vmul.f32 %v265, %v265
        %v455 = vmul.f32 %v266, %v266
        %v456 = vmul.f32 %v267, %v267
        %v457 = vmul.f32 %v268, %v268
        %v458 = vmul.f32 %v269, %v269
        %v459 = vmul.f32 %v270, %v270
        %v460 = vmul.f32 %v271, %v271
        %v461 = vmul.f32 %v272, %v272
        %v462 = vmul.f32 %v273, %v273
        %v463 = vmul.f32 %v274, %v274
        %v464 = vmul.f32 %v275, %v275
        %v465 = vmul.f32 %v276, %v276
        %v466 = vmul.f32 %v277, %v277
        %v467 = vmul.f32 %v278, %v278
        %v468 = vmul.f32 %v279, %v279
        %v469 = vmul.f32 %v280, %v280
        %v470 = vmul.f32 %v281, %v281
        %v471 = vmul.f32 %v282, %v282
        %v472 = vmul.f32 %v283, %v283
        %v473 = vmul.f32 %v284, %v284
        %v474 = vmul.f32 %v285, %v285
        %v475 = vmul.f32 %v286, %v286
        %v476 = vmul.f32 %v287, %v287
        %v477 = vmul.f32 %v288, %v288
        %v478 = vmul.f32 %v289, %v289
        %v479 = vmul.f32 %v290, %v290
        %v480 = vmul.f32 %v291, %v291
        %v481 = vmul.f32 %v292, %v292
        %v482 = vmul.f32 %v293, %v293
        %v483 = vmul.f32 %v294, %v294
        %v484 = vmul.f32 %v295, %v295
        %v485 = vmul.f32 %v296, %v296
        %v486 = vmul.f32 %v297, %v297
        %v487 = vmul.f32 %v298, %v298
        %v488 = vmul.f32 %v299, %v299
        %v489 = vmul.f32 %v300, %v300
        %v490 = vmul.f32 %v301, %v301
        %v491 = vmul.f32 %v302, %v302
        %v492 = vmul.f32 %v303, %v303
        %v493 = vmul.f32 %v304, %v304
        %v494 = vmul.f32 %v305, %v305
        %v495 = vmul.f32 %v306, %v306
        %v496 = vmul.f32 %v307, %v307
        %v497 = vmul.f32 %v308, %v308
        %v498 = vmul.f32 %v309, %v309
        %v499 = vmul.f32 %v310, %v310
        %v500 = vmul.f32 %v311, %v311
        %v501 = vmul.f32 %v312, %v312
        %v502 = vmul.f32 %v313, %v313
        %v503 = vmul.f32 %v314, %v314
        %v504 = vmul.f32 %v315, %v315
        %v505 = vmul.f32 %v316, %v316
        %v506 = vmul.f32 %v317, %v317
        %v507 = vmul.f32 %v318, %v318
        %v508 = vmul.f32 %v319, %v319
        %v509 = vmul.f32 %v320, %v320
        %v510 = vmul.f32 %v321, %v321
        %v511 = vmul.f32 %v322, %v322
        %v512 = vmul.f32 %v323, %v323
        %v513 = vmul.f32 %v324, %v324
        %v514 = vmul.f32 %v325, %v325
        %v515 = vmul.f32 %v326, %v326
        %v516 = vmul.f32 %v327, %v327
        %v517 = vmul.f32 %v328, %v328
        %v518 = vmul.f32 %v329, %v329
        %v519 = vmul.f32 %v330, %v330
        %v520 = vmul.f32 %v331, %v331
        %v521 = vmul.f32 %v332, %v332
        %v522 = vmul.f32 %v333, %v333
        %v523 = vmul.f32 %v334, %v334
        %v524 = vmul.f32 %v335, %v335
        %v525 = vmul.f32 %v336, %v336
        %v526 = vmul.f32 %v337, %v337
        %v527 = vmul.f32 %v338, %v338
        %v528 = vmul.f32 %v339, %v339
        %v529 = vmul.f32 %v340, %v340
        %v530 = vmul.f32 %v341, %v341
        %v531 = vmul.f32 %v342, %v342
        %v532 = vmul.f32 %v343, %v343
        %v533 = vmul.f32 %v344, %v344
        %v534 = vmul.f32 %v345, %v345
        %v535 = vmul.f32 %v346, %v346
        %v536 = vadd.f32 %v347, %v348
        %v537 = vadd.f32 %v536, %v349
        %538 = vadd.xlane.f32.xlu0 %v537
        %v539 = vpop.xlane.xlu0 %538
        %v540 = vadd.f32 %v350, %v351
        %v541 = vadd.f32 %v540, %v352
        %542 = vadd.xlane.f32.xlu0 %v541
        %v543 = vpop.xlane.xlu0 %542
        %v544 = vadd.f32 %v353, %v354
        %v545 = vadd.f32 %v544, %v355
        %546 = vadd.xlane.f32.xlu0 %v545
        %v547 = vpop.xlane.xlu0 %546
        %v548 = vadd.f32 %v356, %v357
        %v549 = vadd.f32 %v548, %v358
        %550 = vadd.xlane.f32.xlu0 %v549
        %v551 = vpop.xlane.xlu0 %550
        %v552 = vadd.f32 %v359, %v360
        %v553 = vadd.f32 %v552, %v361
        %554 = vadd.xlane.f32.xlu0 %v553
        %v555 = vpop.xlane.xlu0 %554
        %v556 = vadd.f32 %v362, %v363
        %v557 = vadd.f32 %v556, %v364
        %558 = vadd.xlane.f32.xlu0 %v557
        %v559 = vpop.xlane.xlu0 %558
        %v560 = vadd.f32 %v365, %v366
        %v561 = vadd.f32 %v560, %v367
        %562 = vadd.xlane.f32.xlu0 %v561
        %v563 = vpop.xlane.xlu0 %562
        %v564 = vadd.f32 %v368, %v369
        %v565 = vadd.f32 %v564, %v370
        %566 = vadd.xlane.f32.xlu0 %v565
        %v567 = vpop.xlane.xlu0 %566
        %v568 = vadd.f32 %v371, %v372
        %v569 = vadd.f32 %v568, %v373
        %570 = vadd.xlane.f32.xlu0 %v569
        %v571 = vpop.xlane.xlu0 %570
        %v572 = vadd.f32 %v374, %v375
        %v573 = vadd.f32 %v572, %v376
        %574 = vadd.xlane.f32.xlu0 %v573
        %v575 = vpop.xlane.xlu0 %574
        %v576 = vadd.f32 %v377, %v378
        %v577 = vadd.f32 %v576, %v379
        %578 = vadd.xlane.f32.xlu0 %v577
        %v579 = vpop.xlane.xlu0 %578
        %v580 = vadd.f32 %v380, %v381
        %v581 = vadd.f32 %v580, %v382
        %582 = vadd.xlane.f32.xlu0 %v581
        %v583 = vpop.xlane.xlu0 %582
        %v584 = vadd.f32 %v383, %v384
        %v585 = vadd.f32 %v584, %v385
        %586 = vadd.xlane.f32.xlu0 %v585
        %v587 = vpop.xlane.xlu0 %586
        %v588 = vadd.f32 %v386, %v387
        %v589 = vadd.f32 %v588, %v388
        %590 = vadd.xlane.f32.xlu0 %v589
        %v591 = vpop.xlane.xlu0 %590
        %v592 = vadd.f32 %v389, %v390
        %v593 = vadd.f32 %v592, %v391
        %594 = vadd.xlane.f32.xlu0 %v593
        %v595 = vpop.xlane.xlu0 %594
        %v596 = vadd.f32 %v392, %v393
        %v597 = vadd.f32 %v596, %v394
        %598 = vadd.xlane.f32.xlu0 %v597
        %v599 = vpop.xlane.xlu0 %598
        %v600 = vadd.f32 %v395, %v396
        %v601 = vadd.f32 %v600, %v397
        %602 = vadd.xlane.f32.xlu0 %v601
        %v603 = vpop.xlane.xlu0 %602
        %v604 = vadd.f32 %v398, %v399
        %v605 = vadd.f32 %v604, %v400
        %606 = vadd.xlane.f32.xlu0 %v605
        %v607 = vpop.xlane.xlu0 %606
        %v608 = vadd.f32 %v401, %v402
        %v609 = vadd.f32 %v608, %v403
        %610 = vadd.xlane.f32.xlu0 %v609
        %v611 = vpop.xlane.xlu0 %610
        %v612 = vadd.f32 %v404, %v405
        %v613 = vadd.f32 %v612, %v406
        %614 = vadd.xlane.f32.xlu0 %v613
        %v615 = vpop.xlane.xlu0 %614
        %v616 = vadd.f32 %v407, %v408
        %v617 = vadd.f32 %v616, %v409
        %618 = vadd.xlane.f32.xlu0 %v617
        %v619 = vpop.xlane.xlu0 %618
        %v620 = vadd.f32 %v410, %v411
        %v621 = vadd.f32 %v620, %v412
        %622 = vadd.xlane.f32.xlu0 %v621
        %v623 = vpop.xlane.xlu0 %622
        %v624 = vadd.f32 %v413, %v414
        %v625 = vadd.f32 %v624, %v415
        %626 = vadd.xlane.f32.xlu0 %v625
        %v627 = vpop.xlane.xlu0 %626
        %v628 = vadd.f32 %v416, %v417
        %v629 = vadd.f32 %v628, %v418
        %630 = vadd.xlane.f32.xlu0 %v629
        %v631 = vpop.xlane.xlu0 %630
        %v632 = vadd.f32 %v419, %v420
        %v633 = vadd.f32 %v632, %v421
        %634 = vadd.xlane.f32.xlu0 %v633
        %v635 = vpop.xlane.xlu0 %634
        %v636 = vadd.f32 %v422, %v423
        %v637 = vadd.f32 %v636, %v424
        %638 = vadd.xlane.f32.xlu0 %v637
        %v639 = vpop.xlane.xlu0 %638
        %v640 = vadd.f32 %v425, %v426
        %v641 = vadd.f32 %v640, %v427
        %642 = vadd.xlane.f32.xlu0 %v641
        %v643 = vpop.xlane.xlu0 %642
        %v644 = vadd.f32 %v428, %v429
        %v645 = vadd.f32 %v644, %v430
        %646 = vadd.xlane.f32.xlu0 %v645
        %v647 = vpop.xlane.xlu0 %646
        %v648 = vadd.f32 %v431, %v432
        %v649 = vadd.f32 %v648, %v433
        %650 = vadd.xlane.f32.xlu0 %v649
        %v651 = vpop.xlane.xlu0 %650
        %v652 = vadd.f32 %v434, %v435
        %v653 = vadd.f32 %v652, %v436
        %654 = vadd.xlane.f32.xlu0 %v653
        %v655 = vpop.xlane.xlu0 %654
        %v656 = vadd.f32 %v437, %v438
        %v657 = vadd.f32 %v656, %v439
        %658 = vadd.xlane.f32.xlu0 %v657
        %v659 = vpop.xlane.xlu0 %658
        %v660 = vadd.f32 %v440, %v441
        %v661 = vadd.f32 %v660, %v442
        %662 = vadd.xlane.f32.xlu0 %v661
        %v663 = vpop.xlane.xlu0 %662
        %v664 = vadd.f32 %v443, %v444
        %v665 = vadd.f32 %v664, %v445
        %666 = vadd.xlane.f32.xlu0 %v665
        %v667 = vpop.xlane.xlu0 %666
        %v668 = vadd.f32 %v446, %v447
        %v669 = vadd.f32 %v668, %v448
        %670 = vadd.xlane.f32.xlu0 %v669
        %v671 = vpop.xlane.xlu0 %670
        %v672 = vadd.f32 %v449, %v450
        %v673 = vadd.f32 %v672, %v451
        %674 = vadd.xlane.f32.xlu0 %v673
        %v675 = vpop.xlane.xlu0 %674
        %v676 = vadd.f32 %v452, %v453
        %v677 = vadd.f32 %v676, %v454
        %678 = vadd.xlane.f32.xlu0 %v677
        %v679 = vpop.xlane.xlu0 %678
        %v680 = vadd.f32 %v455, %v456
        %v681 = vadd.f32 %v680, %v457
        %682 = vadd.xlane.f32.xlu0 %v681
        %v683 = vpop.xlane.xlu0 %682
        %v684 = vadd.f32 %v458, %v459
        %v685 = vadd.f32 %v684, %v460
        %686 = vadd.xlane.f32.xlu0 %v685
        %v687 = vpop.xlane.xlu0 %686
        %v688 = vadd.f32 %v461, %v462
        %v689 = vadd.f32 %v688, %v463
        %690 = vadd.xlane.f32.xlu0 %v689
        %v691 = vpop.xlane.xlu0 %690
        %v692 = vadd.f32 %v464, %v465
        %v693 = vadd.f32 %v692, %v466
        %694 = vadd.xlane.f32.xlu0 %v693
        %v695 = vpop.xlane.xlu0 %694
        %v696 = vadd.f32 %v467, %v468
        %v697 = vadd.f32 %v696, %v469
        %698 = vadd.xlane.f32.xlu0 %v697
        %v699 = vpop.xlane.xlu0 %698
        %v700 = vadd.f32 %v470, %v471
        %v701 = vadd.f32 %v700, %v472
        %702 = vadd.xlane.f32.xlu0 %v701
        %v703 = vpop.xlane.xlu0 %702
        %v704 = vadd.f32 %v473, %v474
        %v705 = vadd.f32 %v704, %v475
        %706 = vadd.xlane.f32.xlu0 %v705
        %v707 = vpop.xlane.xlu0 %706
        %v708 = vadd.f32 %v476, %v477
        %v709 = vadd.f32 %v708, %v478
        %710 = vadd.xlane.f32.xlu0 %v709
        %v711 = vpop.xlane.xlu0 %710
        %v712 = vadd.f32 %v479, %v480
        %v713 = vadd.f32 %v712, %v481
        %714 = vadd.xlane.f32.xlu0 %v713
        %v715 = vpop.xlane.xlu0 %714
        %v716 = vadd.f32 %v482, %v483
        %v717 = vadd.f32 %v716, %v484
        %718 = vadd.xlane.f32.xlu0 %v717
        %v719 = vpop.xlane.xlu0 %718
        %v720 = vadd.f32 %v485, %v486
        %v721 = vadd.f32 %v720, %v487
        %722 = vadd.xlane.f32.xlu0 %v721
        %v723 = vpop.xlane.xlu0 %722
        %v724 = vadd.f32 %v488, %v489
        %v725 = vadd.f32 %v724, %v490
        %726 = vadd.xlane.f32.xlu0 %v725
        %v727 = vpop.xlane.xlu0 %726
        %v728 = vadd.f32 %v491, %v492
        %v729 = vadd.f32 %v728, %v493
        %730 = vadd.xlane.f32.xlu0 %v729
        %v731 = vpop.xlane.xlu0 %730
        %v732 = vadd.f32 %v494, %v495
        %v733 = vadd.f32 %v732, %v496
        %734 = vadd.xlane.f32.xlu0 %v733
        %v735 = vpop.xlane.xlu0 %734
        %v736 = vadd.f32 %v497, %v498
        %v737 = vadd.f32 %v736, %v499
        %738 = vadd.xlane.f32.xlu0 %v737
        %v739 = vpop.xlane.xlu0 %738
        %v740 = vadd.f32 %v500, %v501
        %v741 = vadd.f32 %v740, %v502
        %742 = vadd.xlane.f32.xlu0 %v741
        %v743 = vpop.xlane.xlu0 %742
        %v744 = vadd.f32 %v503, %v504
        %v745 = vadd.f32 %v744, %v505
        %746 = vadd.xlane.f32.xlu0 %v745
        %v747 = vpop.xlane.xlu0 %746
        %v748 = vadd.f32 %v506, %v507
        %v749 = vadd.f32 %v748, %v508
        %750 = vadd.xlane.f32.xlu0 %v749
        %v751 = vpop.xlane.xlu0 %750
        %v752 = vadd.f32 %v509, %v510
        %v753 = vadd.f32 %v752, %v511
        %754 = vadd.xlane.f32.xlu0 %v753
        %v755 = vpop.xlane.xlu0 %754
        %v756 = vadd.f32 %v512, %v513
        %v757 = vadd.f32 %v756, %v514
        %758 = vadd.xlane.f32.xlu0 %v757
        %v759 = vpop.xlane.xlu0 %758
        %v760 = vadd.f32 %v515, %v516
        %v761 = vadd.f32 %v760, %v517
        %762 = vadd.xlane.f32.xlu0 %v761
        %v763 = vpop.xlane.xlu0 %762
        %v764 = vadd.f32 %v518, %v519
        %v765 = vadd.f32 %v764, %v520
        %766 = vadd.xlane.f32.xlu0 %v765
        %v767 = vpop.xlane.xlu0 %766
        %v768 = vadd.f32 %v521, %v522
        %v769 = vadd.f32 %v768, %v523
        %770 = vadd.xlane.f32.xlu0 %v769
        %v771 = vpop.xlane.xlu0 %770
        %v772 = vadd.f32 %v524, %v525
        %v773 = vadd.f32 %v772, %v526
        %774 = vadd.xlane.f32.xlu0 %v773
        %v775 = vpop.xlane.xlu0 %774
        %v776 = vadd.f32 %v527, %v528
        %v777 = vadd.f32 %v776, %v529
        %778 = vadd.xlane.f32.xlu0 %v777
        %v779 = vpop.xlane.xlu0 %778
        %v780 = vadd.f32 %v530, %v531
        %v781 = vadd.f32 %v780, %v532
        %782 = vadd.xlane.f32.xlu0 %v781
        %v783 = vpop.xlane.xlu0 %782
        %v784 = vadd.f32 %v533, %v534
        %v785 = vadd.f32 %v784, %v535
        %786 = vadd.xlane.f32.xlu0 %v785
        %v787 = vpop.xlane.xlu0 %786
        %v788 = vrsqrt.pop %v539
        %v789 = vmul.f32 %v788, %v539
        %v790 = vmul.f32 %v789, %v788
        %v791 = vmul.f32 0.5, %v790
        %v792 = vsub.f32 1.5, %v791
        %v793 = vmul.f32 %v788, %v792
        %v794 = vmul.f32 %v539, %v793
        %vm795 = vcmp.eq.f32.partialorder %v539, inf
        %v796 = vsel %vm795, %v539, %v794
        %vm797 = vcmp.eq.f32.partialorder %v539, 0.0
        %v798 = vand.u32 %v539, 2147483648
        %v799 = vsel %vm797, %v798, %v796
        %v800 = vrsqrt.pop %v543
        %v801 = vmul.f32 %v800, %v543
        %v802 = vmul.f32 %v801, %v800
        %v803 = vmul.f32 0.5, %v802
        %v804 = vsub.f32 1.5, %v803
        %v805 = vmul.f32 %v800, %v804
        %v806 = vmul.f32 %v543, %v805
        %vm807 = vcmp.eq.f32.partialorder %v543, inf
        %v808 = vsel %vm807, %v543, %v806
        %vm809 = vcmp.eq.f32.partialorder %v543, 0.0
        %v810 = vand.u32 %v543, 2147483648
        %v811 = vsel %vm809, %v810, %v808
        %v812 = vrsqrt.pop %v547
        %v813 = vmul.f32 %v812, %v547
        %v814 = vmul.f32 %v813, %v812
        %v815 = vmul.f32 0.5, %v814
        %v816 = vsub.f32 1.5, %v815
        %v817 = vmul.f32 %v812, %v816
        %v818 = vmul.f32 %v547, %v817
        %vm819 = vcmp.eq.f32.partialorder %v547, inf
        %v820 = vsel %vm819, %v547, %v818
        %vm821 = vcmp.eq.f32.partialorder %v547, 0.0
        %v822 = vand.u32 %v547, 2147483648
        %v823 = vsel %vm821, %v822, %v820
        %v824 = vrsqrt.pop %v551
        %v825 = vmul.f32 %v824, %v551
        %v826 = vmul.f32 %v825, %v824
        %v827 = vmul.f32 0.5, %v826
        %v828 = vsub.f32 1.5, %v827
        %v829 = vmul.f32 %v824, %v828
        %v830 = vmul.f32 %v551, %v829
        %vm831 = vcmp.eq.f32.partialorder %v551, inf
        %v832 = vsel %vm831, %v551, %v830
        %vm833 = vcmp.eq.f32.partialorder %v551, 0.0
        %v834 = vand.u32 %v551, 2147483648
        %v835 = vsel %vm833, %v834, %v832
        %v836 = vrsqrt.pop %v555
        %v837 = vmul.f32 %v836, %v555
        %v838 = vmul.f32 %v837, %v836
        %v839 = vmul.f32 0.5, %v838
        %v840 = vsub.f32 1.5, %v839
        %v841 = vmul.f32 %v836, %v840
        %v842 = vmul.f32 %v555, %v841
        %vm843 = vcmp.eq.f32.partialorder %v555, inf
        %v844 = vsel %vm843, %v555, %v842
        %vm845 = vcmp.eq.f32.partialorder %v555, 0.0
        %v846 = vand.u32 %v555, 2147483648
        %v847 = vsel %vm845, %v846, %v844
        %v848 = vrsqrt.pop %v559
        %v849 = vmul.f32 %v848, %v559
        %v850 = vmul.f32 %v849, %v848
        %v851 = vmul.f32 0.5, %v850
        %v852 = vsub.f32 1.5, %v851
        %v853 = vmul.f32 %v848, %v852
        %v854 = vmul.f32 %v559, %v853
        %vm855 = vcmp.eq.f32.partialorder %v559, inf
        %v856 = vsel %vm855, %v559, %v854
        %vm857 = vcmp.eq.f32.partialorder %v559, 0.0
        %v858 = vand.u32 %v559, 2147483648
        %v859 = vsel %vm857, %v858, %v856
        %v860 = vrsqrt.pop %v563
        %v861 = vmul.f32 %v860, %v563
        %v862 = vmul.f32 %v861, %v860
        %v863 = vmul.f32 0.5, %v862
        %v864 = vsub.f32 1.5, %v863
        %v865 = vmul.f32 %v860, %v864
        %v866 = vmul.f32 %v563, %v865
        %vm867 = vcmp.eq.f32.partialorder %v563, inf
        %v868 = vsel %vm867, %v563, %v866
        %vm869 = vcmp.eq.f32.partialorder %v563, 0.0
        %v870 = vand.u32 %v563, 2147483648
        %v871 = vsel %vm869, %v870, %v868
        %v872 = vrsqrt.pop %v567
        %v873 = vmul.f32 %v872, %v567
        %v874 = vmul.f32 %v873, %v872
        %v875 = vmul.f32 0.5, %v874
        %v876 = vsub.f32 1.5, %v875
        %v877 = vmul.f32 %v872, %v876
        %v878 = vmul.f32 %v567, %v877
        %vm879 = vcmp.eq.f32.partialorder %v567, inf
        %v880 = vsel %vm879, %v567, %v878
        %vm881 = vcmp.eq.f32.partialorder %v567, 0.0
        %v882 = vand.u32 %v567, 2147483648
        %v883 = vsel %vm881, %v882, %v880
        %v884 = vrsqrt.pop %v571
        %v885 = vmul.f32 %v884, %v571
        %v886 = vmul.f32 %v885, %v884
        %v887 = vmul.f32 0.5, %v886
        %v888 = vsub.f32 1.5, %v887
        %v889 = vmul.f32 %v884, %v888
        %v890 = vmul.f32 %v571, %v889
        %vm891 = vcmp.eq.f32.partialorder %v571, inf
        %v892 = vsel %vm891, %v571, %v890
        %vm893 = vcmp.eq.f32.partialorder %v571, 0.0
        %v894 = vand.u32 %v571, 2147483648
        %v895 = vsel %vm893, %v894, %v892
        %v896 = vrsqrt.pop %v575
        %v897 = vmul.f32 %v896, %v575
        %v898 = vmul.f32 %v897, %v896
        %v899 = vmul.f32 0.5, %v898
        %v900 = vsub.f32 1.5, %v899
        %v901 = vmul.f32 %v896, %v900
        %v902 = vmul.f32 %v575, %v901
        %vm903 = vcmp.eq.f32.partialorder %v575, inf
        %v904 = vsel %vm903, %v575, %v902
        %vm905 = vcmp.eq.f32.partialorder %v575, 0.0
        %v906 = vand.u32 %v575, 2147483648
        %v907 = vsel %vm905, %v906, %v904
        %v908 = vrsqrt.pop %v579
        %v909 = vmul.f32 %v908, %v579
        %v910 = vmul.f32 %v909, %v908
        %v911 = vmul.f32 0.5, %v910
        %v912 = vsub.f32 1.5, %v911
        %v913 = vmul.f32 %v908, %v912
        %v914 = vmul.f32 %v579, %v913
        %vm915 = vcmp.eq.f32.partialorder %v579, inf
        %v916 = vsel %vm915, %v579, %v914
        %vm917 = vcmp.eq.f32.partialorder %v579, 0.0
        %v918 = vand.u32 %v579, 2147483648
        %v919 = vsel %vm917, %v918, %v916
        %v920 = vrsqrt.pop %v583
        %v921 = vmul.f32 %v920, %v583
        %v922 = vmul.f32 %v921, %v920
        %v923 = vmul.f32 0.5, %v922
        %v924 = vsub.f32 1.5, %v923
        %v925 = vmul.f32 %v920, %v924
        %v926 = vmul.f32 %v583, %v925
        %vm927 = vcmp.eq.f32.partialorder %v583, inf
        %v928 = vsel %vm927, %v583, %v926
        %vm929 = vcmp.eq.f32.partialorder %v583, 0.0
        %v930 = vand.u32 %v583, 2147483648
        %v931 = vsel %vm929, %v930, %v928
        %v932 = vrsqrt.pop %v587
        %v933 = vmul.f32 %v932, %v587
        %v934 = vmul.f32 %v933, %v932
        %v935 = vmul.f32 0.5, %v934
        %v936 = vsub.f32 1.5, %v935
        %v937 = vmul.f32 %v932, %v936
        %v938 = vmul.f32 %v587, %v937
        %vm939 = vcmp.eq.f32.partialorder %v587, inf
        %v940 = vsel %vm939, %v587, %v938
        %vm941 = vcmp.eq.f32.partialorder %v587, 0.0
        %v942 = vand.u32 %v587, 2147483648
        %v943 = vsel %vm941, %v942, %v940
        %v944 = vrsqrt.pop %v591
        %v945 = vmul.f32 %v944, %v591
        %v946 = vmul.f32 %v945, %v944
        %v947 = vmul.f32 0.5, %v946
        %v948 = vsub.f32 1.5, %v947
        %v949 = vmul.f32 %v944, %v948
        %v950 = vmul.f32 %v591, %v949
        %vm951 = vcmp.eq.f32.partialorder %v591, inf
        %v952 = vsel %vm951, %v591, %v950
        %vm953 = vcmp.eq.f32.partialorder %v591, 0.0
        %v954 = vand.u32 %v591, 2147483648
        %v955 = vsel %vm953, %v954, %v952
        %v956 = vrsqrt.pop %v595
        %v957 = vmul.f32 %v956, %v595
        %v958 = vmul.f32 %v957, %v956
        %v959 = vmul.f32 0.5, %v958
        %v960 = vsub.f32 1.5, %v959
        %v961 = vmul.f32 %v956, %v960
        %v962 = vmul.f32 %v595, %v961
        %vm963 = vcmp.eq.f32.partialorder %v595, inf
        %v964 = vsel %vm963, %v595, %v962
        %vm965 = vcmp.eq.f32.partialorder %v595, 0.0
        %v966 = vand.u32 %v595, 2147483648
        %v967 = vsel %vm965, %v966, %v964
        %v968 = vrsqrt.pop %v599
        %v969 = vmul.f32 %v968, %v599
        %v970 = vmul.f32 %v969, %v968
        %v971 = vmul.f32 0.5, %v970
        %v972 = vsub.f32 1.5, %v971
        %v973 = vmul.f32 %v968, %v972
        %v974 = vmul.f32 %v599, %v973
        %vm975 = vcmp.eq.f32.partialorder %v599, inf
        %v976 = vsel %vm975, %v599, %v974
        %vm977 = vcmp.eq.f32.partialorder %v599, 0.0
        %v978 = vand.u32 %v599, 2147483648
        %v979 = vsel %vm977, %v978, %v976
        %v980 = vrsqrt.pop %v603
        %v981 = vmul.f32 %v980, %v603
        %v982 = vmul.f32 %v981, %v980
        %v983 = vmul.f32 0.5, %v982
        %v984 = vsub.f32 1.5, %v983
        %v985 = vmul.f32 %v980, %v984
        %v986 = vmul.f32 %v603, %v985
        %vm987 = vcmp.eq.f32.partialorder %v603, inf
        %v988 = vsel %vm987, %v603, %v986
        %vm989 = vcmp.eq.f32.partialorder %v603, 0.0
        %v990 = vand.u32 %v603, 2147483648
        %v991 = vsel %vm989, %v990, %v988
        %v992 = vrsqrt.pop %v607
        %v993 = vmul.f32 %v992, %v607
        %v994 = vmul.f32 %v993, %v992
        %v995 = vmul.f32 0.5, %v994
        %v996 = vsub.f32 1.5, %v995
        %v997 = vmul.f32 %v992, %v996
        %v998 = vmul.f32 %v607, %v997
        %vm999 = vcmp.eq.f32.partialorder %v607, inf
        %v1000 = vsel %vm999, %v607, %v998
        %vm1001 = vcmp.eq.f32.partialorder %v607, 0.0
        %v1002 = vand.u32 %v607, 2147483648
        %v1003 = vsel %vm1001, %v1002, %v1000
        %v1004 = vrsqrt.pop %v611
        %v1005 = vmul.f32 %v1004, %v611
        %v1006 = vmul.f32 %v1005, %v1004
        %v1007 = vmul.f32 0.5, %v1006
        %v1008 = vsub.f32 1.5, %v1007
        %v1009 = vmul.f32 %v1004, %v1008
        %v1010 = vmul.f32 %v611, %v1009
        %vm1011 = vcmp.eq.f32.partialorder %v611, inf
        %v1012 = vsel %vm1011, %v611, %v1010
        %vm1013 = vcmp.eq.f32.partialorder %v611, 0.0
        %v1014 = vand.u32 %v611, 2147483648
        %v1015 = vsel %vm1013, %v1014, %v1012
        %v1016 = vrsqrt.pop %v615
        %v1017 = vmul.f32 %v1016, %v615
        %v1018 = vmul.f32 %v1017, %v1016
        %v1019 = vmul.f32 0.5, %v1018
        %v1020 = vsub.f32 1.5, %v1019
        %v1021 = vmul.f32 %v1016, %v1020
        %v1022 = vmul.f32 %v615, %v1021
        %vm1023 = vcmp.eq.f32.partialorder %v615, inf
        %v1024 = vsel %vm1023, %v615, %v1022
        %vm1025 = vcmp.eq.f32.partialorder %v615, 0.0
        %v1026 = vand.u32 %v615, 2147483648
        %v1027 = vsel %vm1025, %v1026, %v1024
        %v1028 = vrsqrt.pop %v619
        %v1029 = vmul.f32 %v1028, %v619
        %v1030 = vmul.f32 %v1029, %v1028
        %v1031 = vmul.f32 0.5, %v1030
        %v1032 = vsub.f32 1.5, %v1031
        %v1033 = vmul.f32 %v1028, %v1032
        %v1034 = vmul.f32 %v619, %v1033
        %vm1035 = vcmp.eq.f32.partialorder %v619, inf
        %v1036 = vsel %vm1035, %v619, %v1034
        %vm1037 = vcmp.eq.f32.partialorder %v619, 0.0
        %v1038 = vand.u32 %v619, 2147483648
        %v1039 = vsel %vm1037, %v1038, %v1036
        %v1040 = vrsqrt.pop %v623
        %v1041 = vmul.f32 %v1040, %v623
        %v1042 = vmul.f32 %v1041, %v1040
        %v1043 = vmul.f32 0.5, %v1042
        %v1044 = vsub.f32 1.5, %v1043
        %v1045 = vmul.f32 %v1040, %v1044
        %v1046 = vmul.f32 %v623, %v1045
        %vm1047 = vcmp.eq.f32.partialorder %v623, inf
        %v1048 = vsel %vm1047, %v623, %v1046
        %vm1049 = vcmp.eq.f32.partialorder %v623, 0.0
        %v1050 = vand.u32 %v623, 2147483648
        %v1051 = vsel %vm1049, %v1050, %v1048
        %v1052 = vrsqrt.pop %v627
        %v1053 = vmul.f32 %v1052, %v627
        %v1054 = vmul.f32 %v1053, %v1052
        %v1055 = vmul.f32 0.5, %v1054
        %v1056 = vsub.f32 1.5, %v1055
        %v1057 = vmul.f32 %v1052, %v1056
        %v1058 = vmul.f32 %v627, %v1057
        %vm1059 = vcmp.eq.f32.partialorder %v627, inf
        %v1060 = vsel %vm1059, %v627, %v1058
        %vm1061 = vcmp.eq.f32.partialorder %v627, 0.0
        %v1062 = vand.u32 %v627, 2147483648
        %v1063 = vsel %vm1061, %v1062, %v1060
        %v1064 = vrsqrt.pop %v631
        %v1065 = vmul.f32 %v1064, %v631
        %v1066 = vmul.f32 %v1065, %v1064
        %v1067 = vmul.f32 0.5, %v1066
        %v1068 = vsub.f32 1.5, %v1067
        %v1069 = vmul.f32 %v1064, %v1068
        %v1070 = vmul.f32 %v631, %v1069
        %vm1071 = vcmp.eq.f32.partialorder %v631, inf
        %v1072 = vsel %vm1071, %v631, %v1070
        %vm1073 = vcmp.eq.f32.partialorder %v631, 0.0
        %v1074 = vand.u32 %v631, 2147483648
        %v1075 = vsel %vm1073, %v1074, %v1072
        %v1076 = vrsqrt.pop %v635
        %v1077 = vmul.f32 %v1076, %v635
        %v1078 = vmul.f32 %v1077, %v1076
        %v1079 = vmul.f32 0.5, %v1078
        %v1080 = vsub.f32 1.5, %v1079
        %v1081 = vmul.f32 %v1076, %v1080
        %v1082 = vmul.f32 %v635, %v1081
        %vm1083 = vcmp.eq.f32.partialorder %v635, inf
        %v1084 = vsel %vm1083, %v635, %v1082
        %vm1085 = vcmp.eq.f32.partialorder %v635, 0.0
        %v1086 = vand.u32 %v635, 2147483648
        %v1087 = vsel %vm1085, %v1086, %v1084
        %v1088 = vrsqrt.pop %v639
        %v1089 = vmul.f32 %v1088, %v639
        %v1090 = vmul.f32 %v1089, %v1088
        %v1091 = vmul.f32 0.5, %v1090
        %v1092 = vsub.f32 1.5, %v1091
        %v1093 = vmul.f32 %v1088, %v1092
        %v1094 = vmul.f32 %v639, %v1093
        %vm1095 = vcmp.eq.f32.partialorder %v639, inf
        %v1096 = vsel %vm1095, %v639, %v1094
        %vm1097 = vcmp.eq.f32.partialorder %v639, 0.0
        %v1098 = vand.u32 %v639, 2147483648
        %v1099 = vsel %vm1097, %v1098, %v1096
        %v1100 = vrsqrt.pop %v643
        %v1101 = vmul.f32 %v1100, %v643
        %v1102 = vmul.f32 %v1101, %v1100
        %v1103 = vmul.f32 0.5, %v1102
        %v1104 = vsub.f32 1.5, %v1103
        %v1105 = vmul.f32 %v1100, %v1104
        %v1106 = vmul.f32 %v643, %v1105
        %vm1107 = vcmp.eq.f32.partialorder %v643, inf
        %v1108 = vsel %vm1107, %v643, %v1106
        %vm1109 = vcmp.eq.f32.partialorder %v643, 0.0
        %v1110 = vand.u32 %v643, 2147483648
        %v1111 = vsel %vm1109, %v1110, %v1108
        %v1112 = vrsqrt.pop %v647
        %v1113 = vmul.f32 %v1112, %v647
        %v1114 = vmul.f32 %v1113, %v1112
        %v1115 = vmul.f32 0.5, %v1114
        %v1116 = vsub.f32 1.5, %v1115
        %v1117 = vmul.f32 %v1112, %v1116
        %v1118 = vmul.f32 %v647, %v1117
        %vm1119 = vcmp.eq.f32.partialorder %v647, inf
        %v1120 = vsel %vm1119, %v647, %v1118
        %vm1121 = vcmp.eq.f32.partialorder %v647, 0.0
        %v1122 = vand.u32 %v647, 2147483648
        %v1123 = vsel %vm1121, %v1122, %v1120
        %v1124 = vrsqrt.pop %v651
        %v1125 = vmul.f32 %v1124, %v651
        %v1126 = vmul.f32 %v1125, %v1124
        %v1127 = vmul.f32 0.5, %v1126
        %v1128 = vsub.f32 1.5, %v1127
        %v1129 = vmul.f32 %v1124, %v1128
        %v1130 = vmul.f32 %v651, %v1129
        %vm1131 = vcmp.eq.f32.partialorder %v651, inf
        %v1132 = vsel %vm1131, %v651, %v1130
        %vm1133 = vcmp.eq.f32.partialorder %v651, 0.0
        %v1134 = vand.u32 %v651, 2147483648
        %v1135 = vsel %vm1133, %v1134, %v1132
        %v1136 = vrsqrt.pop %v655
        %v1137 = vmul.f32 %v1136, %v655
        %v1138 = vmul.f32 %v1137, %v1136
        %v1139 = vmul.f32 0.5, %v1138
        %v1140 = vsub.f32 1.5, %v1139
        %v1141 = vmul.f32 %v1136, %v1140
        %v1142 = vmul.f32 %v655, %v1141
        %vm1143 = vcmp.eq.f32.partialorder %v655, inf
        %v1144 = vsel %vm1143, %v655, %v1142
        %vm1145 = vcmp.eq.f32.partialorder %v655, 0.0
        %v1146 = vand.u32 %v655, 2147483648
        %v1147 = vsel %vm1145, %v1146, %v1144
        %v1148 = vrsqrt.pop %v659
        %v1149 = vmul.f32 %v1148, %v659
        %v1150 = vmul.f32 %v1149, %v1148
        %v1151 = vmul.f32 0.5, %v1150
        %v1152 = vsub.f32 1.5, %v1151
        %v1153 = vmul.f32 %v1148, %v1152
        %v1154 = vmul.f32 %v659, %v1153
        %vm1155 = vcmp.eq.f32.partialorder %v659, inf
        %v1156 = vsel %vm1155, %v659, %v1154
        %vm1157 = vcmp.eq.f32.partialorder %v659, 0.0
        %v1158 = vand.u32 %v659, 2147483648
        %v1159 = vsel %vm1157, %v1158, %v1156
        %v1160 = vrsqrt.pop %v663
        %v1161 = vmul.f32 %v1160, %v663
        %v1162 = vmul.f32 %v1161, %v1160
        %v1163 = vmul.f32 0.5, %v1162
        %v1164 = vsub.f32 1.5, %v1163
        %v1165 = vmul.f32 %v1160, %v1164
        %v1166 = vmul.f32 %v663, %v1165
        %vm1167 = vcmp.eq.f32.partialorder %v663, inf
        %v1168 = vsel %vm1167, %v663, %v1166
        %vm1169 = vcmp.eq.f32.partialorder %v663, 0.0
        %v1170 = vand.u32 %v663, 2147483648
        %v1171 = vsel %vm1169, %v1170, %v1168
        %v1172 = vrsqrt.pop %v667
        %v1173 = vmul.f32 %v1172, %v667
        %v1174 = vmul.f32 %v1173, %v1172
        %v1175 = vmul.f32 0.5, %v1174
        %v1176 = vsub.f32 1.5, %v1175
        %v1177 = vmul.f32 %v1172, %v1176
        %v1178 = vmul.f32 %v667, %v1177
        %vm1179 = vcmp.eq.f32.partialorder %v667, inf
        %v1180 = vsel %vm1179, %v667, %v1178
        %vm1181 = vcmp.eq.f32.partialorder %v667, 0.0
        %v1182 = vand.u32 %v667, 2147483648
        %v1183 = vsel %vm1181, %v1182, %v1180
        %v1184 = vrsqrt.pop %v671
        %v1185 = vmul.f32 %v1184, %v671
        %v1186 = vmul.f32 %v1185, %v1184
        %v1187 = vmul.f32 0.5, %v1186
        %v1188 = vsub.f32 1.5, %v1187
        %v1189 = vmul.f32 %v1184, %v1188
        %v1190 = vmul.f32 %v671, %v1189
        %vm1191 = vcmp.eq.f32.partialorder %v671, inf
        %v1192 = vsel %vm1191, %v671, %v1190
        %vm1193 = vcmp.eq.f32.partialorder %v671, 0.0
        %v1194 = vand.u32 %v671, 2147483648
        %v1195 = vsel %vm1193, %v1194, %v1192
        %v1196 = vrsqrt.pop %v675
        %v1197 = vmul.f32 %v1196, %v675
        %v1198 = vmul.f32 %v1197, %v1196
        %v1199 = vmul.f32 0.5, %v1198
        %v1200 = vsub.f32 1.5, %v1199
        %v1201 = vmul.f32 %v1196, %v1200
        %v1202 = vmul.f32 %v675, %v1201
        %vm1203 = vcmp.eq.f32.partialorder %v675, inf
        %v1204 = vsel %vm1203, %v675, %v1202
        %vm1205 = vcmp.eq.f32.partialorder %v675, 0.0
        %v1206 = vand.u32 %v675, 2147483648
        %v1207 = vsel %vm1205, %v1206, %v1204
        %v1208 = vrsqrt.pop %v679
        %v1209 = vmul.f32 %v1208, %v679
        %v1210 = vmul.f32 %v1209, %v1208
        %v1211 = vmul.f32 0.5, %v1210
        %v1212 = vsub.f32 1.5, %v1211
        %v1213 = vmul.f32 %v1208, %v1212
        %v1214 = vmul.f32 %v679, %v1213
        %vm1215 = vcmp.eq.f32.partialorder %v679, inf
        %v1216 = vsel %vm1215, %v679, %v1214
        %vm1217 = vcmp.eq.f32.partialorder %v679, 0.0
        %v1218 = vand.u32 %v679, 2147483648
        %v1219 = vsel %vm1217, %v1218, %v1216
        %v1220 = vrsqrt.pop %v683
        %v1221 = vmul.f32 %v1220, %v683
        %v1222 = vmul.f32 %v1221, %v1220
        %v1223 = vmul.f32 0.5, %v1222
        %v1224 = vsub.f32 1.5, %v1223
        %v1225 = vmul.f32 %v1220, %v1224
        %v1226 = vmul.f32 %v683, %v1225
        %vm1227 = vcmp.eq.f32.partialorder %v683, inf
        %v1228 = vsel %vm1227, %v683, %v1226
        %vm1229 = vcmp.eq.f32.partialorder %v683, 0.0
        %v1230 = vand.u32 %v683, 2147483648
        %v1231 = vsel %vm1229, %v1230, %v1228
        %v1232 = vrsqrt.pop %v687
        %v1233 = vmul.f32 %v1232, %v687
        %v1234 = vmul.f32 %v1233, %v1232
        %v1235 = vmul.f32 0.5, %v1234
        %v1236 = vsub.f32 1.5, %v1235
        %v1237 = vmul.f32 %v1232, %v1236
        %v1238 = vmul.f32 %v687, %v1237
        %vm1239 = vcmp.eq.f32.partialorder %v687, inf
        %v1240 = vsel %vm1239, %v687, %v1238
        %vm1241 = vcmp.eq.f32.partialorder %v687, 0.0
        %v1242 = vand.u32 %v687, 2147483648
        %v1243 = vsel %vm1241, %v1242, %v1240
        %v1244 = vrsqrt.pop %v691
        %v1245 = vmul.f32 %v1244, %v691
        %v1246 = vmul.f32 %v1245, %v1244
        %v1247 = vmul.f32 0.5, %v1246
        %v1248 = vsub.f32 1.5, %v1247
        %v1249 = vmul.f32 %v1244, %v1248
        %v1250 = vmul.f32 %v691, %v1249
        %vm1251 = vcmp.eq.f32.partialorder %v691, inf
        %v1252 = vsel %vm1251, %v691, %v1250
        %vm1253 = vcmp.eq.f32.partialorder %v691, 0.0
        %v1254 = vand.u32 %v691, 2147483648
        %v1255 = vsel %vm1253, %v1254, %v1252
        %v1256 = vrsqrt.pop %v695
        %v1257 = vmul.f32 %v1256, %v695
        %v1258 = vmul.f32 %v1257, %v1256
        %v1259 = vmul.f32 0.5, %v1258
        %v1260 = vsub.f32 1.5, %v1259
        %v1261 = vmul.f32 %v1256, %v1260
        %v1262 = vmul.f32 %v695, %v1261
        %vm1263 = vcmp.eq.f32.partialorder %v695, inf
        %v1264 = vsel %vm1263, %v695, %v1262
        %vm1265 = vcmp.eq.f32.partialorder %v695, 0.0
        %v1266 = vand.u32 %v695, 2147483648
        %v1267 = vsel %vm1265, %v1266, %v1264
        %v1268 = vrsqrt.pop %v699
        %v1269 = vmul.f32 %v1268, %v699
        %v1270 = vmul.f32 %v1269, %v1268
        %v1271 = vmul.f32 0.5, %v1270
        %v1272 = vsub.f32 1.5, %v1271
        %v1273 = vmul.f32 %v1268, %v1272
        %v1274 = vmul.f32 %v699, %v1273
        %vm1275 = vcmp.eq.f32.partialorder %v699, inf
        %v1276 = vsel %vm1275, %v699, %v1274
        %vm1277 = vcmp.eq.f32.partialorder %v699, 0.0
        %v1278 = vand.u32 %v699, 2147483648
        %v1279 = vsel %vm1277, %v1278, %v1276
        %v1280 = vrsqrt.pop %v703
        %v1281 = vmul.f32 %v1280, %v703
        %v1282 = vmul.f32 %v1281, %v1280
        %v1283 = vmul.f32 0.5, %v1282
        %v1284 = vsub.f32 1.5, %v1283
        %v1285 = vmul.f32 %v1280, %v1284
        %v1286 = vmul.f32 %v703, %v1285
        %vm1287 = vcmp.eq.f32.partialorder %v703, inf
        %v1288 = vsel %vm1287, %v703, %v1286
        %vm1289 = vcmp.eq.f32.partialorder %v703, 0.0
        %v1290 = vand.u32 %v703, 2147483648
        %v1291 = vsel %vm1289, %v1290, %v1288
        %v1292 = vrsqrt.pop %v707
        %v1293 = vmul.f32 %v1292, %v707
        %v1294 = vmul.f32 %v1293, %v1292
        %v1295 = vmul.f32 0.5, %v1294
        %v1296 = vsub.f32 1.5, %v1295
        %v1297 = vmul.f32 %v1292, %v1296
        %v1298 = vmul.f32 %v707, %v1297
        %vm1299 = vcmp.eq.f32.partialorder %v707, inf
        %v1300 = vsel %vm1299, %v707, %v1298
        %vm1301 = vcmp.eq.f32.partialorder %v707, 0.0
        %v1302 = vand.u32 %v707, 2147483648
        %v1303 = vsel %vm1301, %v1302, %v1300
        %v1304 = vrsqrt.pop %v711
        %v1305 = vmul.f32 %v1304, %v711
        %v1306 = vmul.f32 %v1305, %v1304
        %v1307 = vmul.f32 0.5, %v1306
        %v1308 = vsub.f32 1.5, %v1307
        %v1309 = vmul.f32 %v1304, %v1308
        %v1310 = vmul.f32 %v711, %v1309
        %vm1311 = vcmp.eq.f32.partialorder %v711, inf
        %v1312 = vsel %vm1311, %v711, %v1310
        %vm1313 = vcmp.eq.f32.partialorder %v711, 0.0
        %v1314 = vand.u32 %v711, 2147483648
        %v1315 = vsel %vm1313, %v1314, %v1312
        %v1316 = vrsqrt.pop %v715
        %v1317 = vmul.f32 %v1316, %v715
        %v1318 = vmul.f32 %v1317, %v1316
        %v1319 = vmul.f32 0.5, %v1318
        %v1320 = vsub.f32 1.5, %v1319
        %v1321 = vmul.f32 %v1316, %v1320
        %v1322 = vmul.f32 %v715, %v1321
        %vm1323 = vcmp.eq.f32.partialorder %v715, inf
        %v1324 = vsel %vm1323, %v715, %v1322
        %vm1325 = vcmp.eq.f32.partialorder %v715, 0.0
        %v1326 = vand.u32 %v715, 2147483648
        %v1327 = vsel %vm1325, %v1326, %v1324
        %v1328 = vrsqrt.pop %v719
        %v1329 = vmul.f32 %v1328, %v719
        %v1330 = vmul.f32 %v1329, %v1328
        %v1331 = vmul.f32 0.5, %v1330
        %v1332 = vsub.f32 1.5, %v1331
        %v1333 = vmul.f32 %v1328, %v1332
        %v1334 = vmul.f32 %v719, %v1333
        %vm1335 = vcmp.eq.f32.partialorder %v719, inf
        %v1336 = vsel %vm1335, %v719, %v1334
        %vm1337 = vcmp.eq.f32.partialorder %v719, 0.0
        %v1338 = vand.u32 %v719, 2147483648
        %v1339 = vsel %vm1337, %v1338, %v1336
        %v1340 = vrsqrt.pop %v723
        %v1341 = vmul.f32 %v1340, %v723
        %v1342 = vmul.f32 %v1341, %v1340
        %v1343 = vmul.f32 0.5, %v1342
        %v1344 = vsub.f32 1.5, %v1343
        %v1345 = vmul.f32 %v1340, %v1344
        %v1346 = vmul.f32 %v723, %v1345
        %vm1347 = vcmp.eq.f32.partialorder %v723, inf
        %v1348 = vsel %vm1347, %v723, %v1346
        %vm1349 = vcmp.eq.f32.partialorder %v723, 0.0
        %v1350 = vand.u32 %v723, 2147483648
        %v1351 = vsel %vm1349, %v1350, %v1348
        %v1352 = vrsqrt.pop %v727
        %v1353 = vmul.f32 %v1352, %v727
        %v1354 = vmul.f32 %v1353, %v1352
        %v1355 = vmul.f32 0.5, %v1354
        %v1356 = vsub.f32 1.5, %v1355
        %v1357 = vmul.f32 %v1352, %v1356
        %v1358 = vmul.f32 %v727, %v1357
        %vm1359 = vcmp.eq.f32.partialorder %v727, inf
        %v1360 = vsel %vm1359, %v727, %v1358
        %vm1361 = vcmp.eq.f32.partialorder %v727, 0.0
        %v1362 = vand.u32 %v727, 2147483648
        %v1363 = vsel %vm1361, %v1362, %v1360
        %v1364 = vrsqrt.pop %v731
        %v1365 = vmul.f32 %v1364, %v731
        %v1366 = vmul.f32 %v1365, %v1364
        %v1367 = vmul.f32 0.5, %v1366
        %v1368 = vsub.f32 1.5, %v1367
        %v1369 = vmul.f32 %v1364, %v1368
        %v1370 = vmul.f32 %v731, %v1369
        %vm1371 = vcmp.eq.f32.partialorder %v731, inf
        %v1372 = vsel %vm1371, %v731, %v1370
        %vm1373 = vcmp.eq.f32.partialorder %v731, 0.0
        %v1374 = vand.u32 %v731, 2147483648
        %v1375 = vsel %vm1373, %v1374, %v1372
        %v1376 = vrsqrt.pop %v735
        %v1377 = vmul.f32 %v1376, %v735
        %v1378 = vmul.f32 %v1377, %v1376
        %v1379 = vmul.f32 0.5, %v1378
        %v1380 = vsub.f32 1.5, %v1379
        %v1381 = vmul.f32 %v1376, %v1380
        %v1382 = vmul.f32 %v735, %v1381
        %vm1383 = vcmp.eq.f32.partialorder %v735, inf
        %v1384 = vsel %vm1383, %v735, %v1382
        %vm1385 = vcmp.eq.f32.partialorder %v735, 0.0
        %v1386 = vand.u32 %v735, 2147483648
        %v1387 = vsel %vm1385, %v1386, %v1384
        %v1388 = vrsqrt.pop %v739
        %v1389 = vmul.f32 %v1388, %v739
        %v1390 = vmul.f32 %v1389, %v1388
        %v1391 = vmul.f32 0.5, %v1390
        %v1392 = vsub.f32 1.5, %v1391
        %v1393 = vmul.f32 %v1388, %v1392
        %v1394 = vmul.f32 %v739, %v1393
        %vm1395 = vcmp.eq.f32.partialorder %v739, inf
        %v1396 = vsel %vm1395, %v739, %v1394
        %vm1397 = vcmp.eq.f32.partialorder %v739, 0.0
        %v1398 = vand.u32 %v739, 2147483648
        %v1399 = vsel %vm1397, %v1398, %v1396
        %v1400 = vrsqrt.pop %v743
        %v1401 = vmul.f32 %v1400, %v743
        %v1402 = vmul.f32 %v1401, %v1400
        %v1403 = vmul.f32 0.5, %v1402
        %v1404 = vsub.f32 1.5, %v1403
        %v1405 = vmul.f32 %v1400, %v1404
        %v1406 = vmul.f32 %v743, %v1405
        %vm1407 = vcmp.eq.f32.partialorder %v743, inf
        %v1408 = vsel %vm1407, %v743, %v1406
        %vm1409 = vcmp.eq.f32.partialorder %v743, 0.0
        %v1410 = vand.u32 %v743, 2147483648
        %v1411 = vsel %vm1409, %v1410, %v1408
        %v1412 = vrsqrt.pop %v747
        %v1413 = vmul.f32 %v1412, %v747
        %v1414 = vmul.f32 %v1413, %v1412
        %v1415 = vmul.f32 0.5, %v1414
        %v1416 = vsub.f32 1.5, %v1415
        %v1417 = vmul.f32 %v1412, %v1416
        %v1418 = vmul.f32 %v747, %v1417
        %vm1419 = vcmp.eq.f32.partialorder %v747, inf
        %v1420 = vsel %vm1419, %v747, %v1418
        %vm1421 = vcmp.eq.f32.partialorder %v747, 0.0
        %v1422 = vand.u32 %v747, 2147483648
        %v1423 = vsel %vm1421, %v1422, %v1420
        %v1424 = vrsqrt.pop %v751
        %v1425 = vmul.f32 %v1424, %v751
        %v1426 = vmul.f32 %v1425, %v1424
        %v1427 = vmul.f32 0.5, %v1426
        %v1428 = vsub.f32 1.5, %v1427
        %v1429 = vmul.f32 %v1424, %v1428
        %v1430 = vmul.f32 %v751, %v1429
        %vm1431 = vcmp.eq.f32.partialorder %v751, inf
        %v1432 = vsel %vm1431, %v751, %v1430
        %vm1433 = vcmp.eq.f32.partialorder %v751, 0.0
        %v1434 = vand.u32 %v751, 2147483648
        %v1435 = vsel %vm1433, %v1434, %v1432
        %v1436 = vrsqrt.pop %v755
        %v1437 = vmul.f32 %v1436, %v755
        %v1438 = vmul.f32 %v1437, %v1436
        %v1439 = vmul.f32 0.5, %v1438
        %v1440 = vsub.f32 1.5, %v1439
        %v1441 = vmul.f32 %v1436, %v1440
        %v1442 = vmul.f32 %v755, %v1441
        %vm1443 = vcmp.eq.f32.partialorder %v755, inf
        %v1444 = vsel %vm1443, %v755, %v1442
        %vm1445 = vcmp.eq.f32.partialorder %v755, 0.0
        %v1446 = vand.u32 %v755, 2147483648
        %v1447 = vsel %vm1445, %v1446, %v1444
        %v1448 = vrsqrt.pop %v759
        %v1449 = vmul.f32 %v1448, %v759
        %v1450 = vmul.f32 %v1449, %v1448
        %v1451 = vmul.f32 0.5, %v1450
        %v1452 = vsub.f32 1.5, %v1451
        %v1453 = vmul.f32 %v1448, %v1452
        %v1454 = vmul.f32 %v759, %v1453
        %vm1455 = vcmp.eq.f32.partialorder %v759, inf
        %v1456 = vsel %vm1455, %v759, %v1454
        %vm1457 = vcmp.eq.f32.partialorder %v759, 0.0
        %v1458 = vand.u32 %v759, 2147483648
        %v1459 = vsel %vm1457, %v1458, %v1456
        %v1460 = vrsqrt.pop %v763
        %v1461 = vmul.f32 %v1460, %v763
        %v1462 = vmul.f32 %v1461, %v1460
        %v1463 = vmul.f32 0.5, %v1462
        %v1464 = vsub.f32 1.5, %v1463
        %v1465 = vmul.f32 %v1460, %v1464
        %v1466 = vmul.f32 %v763, %v1465
        %vm1467 = vcmp.eq.f32.partialorder %v763, inf
        %v1468 = vsel %vm1467, %v763, %v1466
        %vm1469 = vcmp.eq.f32.partialorder %v763, 0.0
        %v1470 = vand.u32 %v763, 2147483648
        %v1471 = vsel %vm1469, %v1470, %v1468
        %v1472 = vrsqrt.pop %v767
        %v1473 = vmul.f32 %v1472, %v767
        %v1474 = vmul.f32 %v1473, %v1472
        %v1475 = vmul.f32 0.5, %v1474
        %v1476 = vsub.f32 1.5, %v1475
        %v1477 = vmul.f32 %v1472, %v1476
        %v1478 = vmul.f32 %v767, %v1477
        %vm1479 = vcmp.eq.f32.partialorder %v767, inf
        %v1480 = vsel %vm1479, %v767, %v1478
        %vm1481 = vcmp.eq.f32.partialorder %v767, 0.0
        %v1482 = vand.u32 %v767, 2147483648
        %v1483 = vsel %vm1481, %v1482, %v1480
        %v1484 = vrsqrt.pop %v771
        %v1485 = vmul.f32 %v1484, %v771
        %v1486 = vmul.f32 %v1485, %v1484
        %v1487 = vmul.f32 0.5, %v1486
        %v1488 = vsub.f32 1.5, %v1487
        %v1489 = vmul.f32 %v1484, %v1488
        %v1490 = vmul.f32 %v771, %v1489
        %vm1491 = vcmp.eq.f32.partialorder %v771, inf
        %v1492 = vsel %vm1491, %v771, %v1490
        %vm1493 = vcmp.eq.f32.partialorder %v771, 0.0
        %v1494 = vand.u32 %v771, 2147483648
        %v1495 = vsel %vm1493, %v1494, %v1492
        %v1496 = vrsqrt.pop %v775
        %v1497 = vmul.f32 %v1496, %v775
        %v1498 = vmul.f32 %v1497, %v1496
        %v1499 = vmul.f32 0.5, %v1498
        %v1500 = vsub.f32 1.5, %v1499
        %v1501 = vmul.f32 %v1496, %v1500
        %v1502 = vmul.f32 %v775, %v1501
        %vm1503 = vcmp.eq.f32.partialorder %v775, inf
        %v1504 = vsel %vm1503, %v775, %v1502
        %vm1505 = vcmp.eq.f32.partialorder %v775, 0.0
        %v1506 = vand.u32 %v775, 2147483648
        %v1507 = vsel %vm1505, %v1506, %v1504
        %v1508 = vrsqrt.pop %v779
        %v1509 = vmul.f32 %v1508, %v779
        %v1510 = vmul.f32 %v1509, %v1508
        %v1511 = vmul.f32 0.5, %v1510
        %v1512 = vsub.f32 1.5, %v1511
        %v1513 = vmul.f32 %v1508, %v1512
        %v1514 = vmul.f32 %v779, %v1513
        %vm1515 = vcmp.eq.f32.partialorder %v779, inf
        %v1516 = vsel %vm1515, %v779, %v1514
        %vm1517 = vcmp.eq.f32.partialorder %v779, 0.0
        %v1518 = vand.u32 %v779, 2147483648
        %v1519 = vsel %vm1517, %v1518, %v1516
        %v1520 = vrsqrt.pop %v783
        %v1521 = vmul.f32 %v1520, %v783
        %v1522 = vmul.f32 %v1521, %v1520
        %v1523 = vmul.f32 0.5, %v1522
        %v1524 = vsub.f32 1.5, %v1523
        %v1525 = vmul.f32 %v1520, %v1524
        %v1526 = vmul.f32 %v783, %v1525
        %vm1527 = vcmp.eq.f32.partialorder %v783, inf
        %v1528 = vsel %vm1527, %v783, %v1526
        %vm1529 = vcmp.eq.f32.partialorder %v783, 0.0
        %v1530 = vand.u32 %v783, 2147483648
        %v1531 = vsel %vm1529, %v1530, %v1528
        %v1532 = vrsqrt.pop %v787
        %v1533 = vmul.f32 %v1532, %v787
        %v1534 = vmul.f32 %v1533, %v1532
        %v1535 = vmul.f32 0.5, %v1534
        %v1536 = vsub.f32 1.5, %v1535
        %v1537 = vmul.f32 %v1532, %v1536
        %v1538 = vmul.f32 %v787, %v1537
        %vm1539 = vcmp.eq.f32.partialorder %v787, inf
        %v1540 = vsel %vm1539, %v787, %v1538
        %vm1541 = vcmp.eq.f32.partialorder %v787, 0.0
        %v1542 = vand.u32 %v787, 2147483648
        %v1543 = vsel %vm1541, %v1542, %v1540
        %v1544 = vmax.f32 %v799, 1e-12
        %v1545 = vmax.f32 %v811, 1e-12
        %v1546 = vmax.f32 %v823, 1e-12
        %v1547 = vmax.f32 %v835, 1e-12
        %v1548 = vmax.f32 %v847, 1e-12
        %v1549 = vmax.f32 %v859, 1e-12
        %v1550 = vmax.f32 %v871, 1e-12
        %v1551 = vmax.f32 %v883, 1e-12
        %v1552 = vmax.f32 %v895, 1e-12
        %v1553 = vmax.f32 %v907, 1e-12
        %v1554 = vmax.f32 %v919, 1e-12
        %v1555 = vmax.f32 %v931, 1e-12
        %v1556 = vmax.f32 %v943, 1e-12
        %v1557 = vmax.f32 %v955, 1e-12
        %v1558 = vmax.f32 %v967, 1e-12
        %v1559 = vmax.f32 %v979, 1e-12
        %v1560 = vmax.f32 %v991, 1e-12
        %v1561 = vmax.f32 %v1003, 1e-12
        %v1562 = vmax.f32 %v1015, 1e-12
        %v1563 = vmax.f32 %v1027, 1e-12
        %v1564 = vmax.f32 %v1039, 1e-12
        %v1565 = vmax.f32 %v1051, 1e-12
        %v1566 = vmax.f32 %v1063, 1e-12
        %v1567 = vmax.f32 %v1075, 1e-12
        %v1568 = vmax.f32 %v1087, 1e-12
        %v1569 = vmax.f32 %v1099, 1e-12
        %v1570 = vmax.f32 %v1111, 1e-12
        %v1571 = vmax.f32 %v1123, 1e-12
        %v1572 = vmax.f32 %v1135, 1e-12
        %v1573 = vmax.f32 %v1147, 1e-12
        %v1574 = vmax.f32 %v1159, 1e-12
        %v1575 = vmax.f32 %v1171, 1e-12
        %v1576 = vmax.f32 %v1183, 1e-12
        %v1577 = vmax.f32 %v1195, 1e-12
        %v1578 = vmax.f32 %v1207, 1e-12
        %v1579 = vmax.f32 %v1219, 1e-12
        %v1580 = vmax.f32 %v1231, 1e-12
        %v1581 = vmax.f32 %v1243, 1e-12
        %v1582 = vmax.f32 %v1255, 1e-12
        %v1583 = vmax.f32 %v1267, 1e-12
        %v1584 = vmax.f32 %v1279, 1e-12
        %v1585 = vmax.f32 %v1291, 1e-12
        %v1586 = vmax.f32 %v1303, 1e-12
        %v1587 = vmax.f32 %v1315, 1e-12
        %v1588 = vmax.f32 %v1327, 1e-12
        %v1589 = vmax.f32 %v1339, 1e-12
        %v1590 = vmax.f32 %v1351, 1e-12
        %v1591 = vmax.f32 %v1363, 1e-12
        %v1592 = vmax.f32 %v1375, 1e-12
        %v1593 = vmax.f32 %v1387, 1e-12
        %v1594 = vmax.f32 %v1399, 1e-12
        %v1595 = vmax.f32 %v1411, 1e-12
        %v1596 = vmax.f32 %v1423, 1e-12
        %v1597 = vmax.f32 %v1435, 1e-12
        %v1598 = vmax.f32 %v1447, 1e-12
        %v1599 = vmax.f32 %v1459, 1e-12
        %v1600 = vmax.f32 %v1471, 1e-12
        %v1601 = vmax.f32 %v1483, 1e-12
        %v1602 = vmax.f32 %v1495, 1e-12
        %v1603 = vmax.f32 %v1507, 1e-12
        %v1604 = vmax.f32 %v1519, 1e-12
        %v1605 = vmax.f32 %v1531, 1e-12
        %v1606 = vmax.f32 %v1543, 1e-12
        %v1607 = vrcp.pop %v1544
        %v1608 = vmul.f32 %v1544, %v1607
        %v1609 = vsub.f32 1.0, %v1608
        %v1610 = vmul.f32 %v1607, %v1609
        %v1611 = vadd.f32 %v1607, %v1610
        %vm1612 = vweird.f32 %v1544
        %vm1613 = vweird.f32 %v1607
        %vm1614 = vmor %vm1612, %vm1613
        %v1615 = vsel %vm1614, %v1607, %v1611
        %v1616 = vand.u32 2147483647, %v1544
        %vm1617 = vcmp.eq.f32.partialorder %v1616, 8.507059e+37
        %v1618 = vand.u32 %v1544, 2147483648
        %v1619 = vor.u32 1.1754944e-38, %v1618
        %v1620 = vsel %vm1617, %v1619, %v1615
        %v1621 = vrcp.pop %v1545
        %v1622 = vmul.f32 %v1545, %v1621
        %v1623 = vsub.f32 1.0, %v1622
        %v1624 = vmul.f32 %v1621, %v1623
        %v1625 = vadd.f32 %v1621, %v1624
        %vm1626 = vweird.f32 %v1545
        %vm1627 = vweird.f32 %v1621
        %vm1628 = vmor %vm1626, %vm1627
        %v1629 = vsel %vm1628, %v1621, %v1625
        %v1630 = vand.u32 2147483647, %v1545
        %vm1631 = vcmp.eq.f32.partialorder %v1630, 8.507059e+37
        %v1632 = vand.u32 %v1545, 2147483648
        %v1633 = vor.u32 1.1754944e-38, %v1632
        %v1634 = vsel %vm1631, %v1633, %v1629
        %v1635 = vrcp.pop %v1546
        %v1636 = vmul.f32 %v1546, %v1635
        %v1637 = vsub.f32 1.0, %v1636
        %v1638 = vmul.f32 %v1635, %v1637
        %v1639 = vadd.f32 %v1635, %v1638
        %vm1640 = vweird.f32 %v1546
        %vm1641 = vweird.f32 %v1635
        %vm1642 = vmor %vm1640, %vm1641
        %v1643 = vsel %vm1642, %v1635, %v1639
        %v1644 = vand.u32 2147483647, %v1546
        %vm1645 = vcmp.eq.f32.partialorder %v1644, 8.507059e+37
        %v1646 = vand.u32 %v1546, 2147483648
        %v1647 = vor.u32 1.1754944e-38, %v1646
        %v1648 = vsel %vm1645, %v1647, %v1643
        %v1649 = vrcp.pop %v1547
        %v1650 = vmul.f32 %v1547, %v1649
        %v1651 = vsub.f32 1.0, %v1650
        %v1652 = vmul.f32 %v1649, %v1651
        %v1653 = vadd.f32 %v1649, %v1652
        %vm1654 = vweird.f32 %v1547
        %vm1655 = vweird.f32 %v1649
        %vm1656 = vmor %vm1654, %vm1655
        %v1657 = vsel %vm1656, %v1649, %v1653
        %v1658 = vand.u32 2147483647, %v1547
        %vm1659 = vcmp.eq.f32.partialorder %v1658, 8.507059e+37
        %v1660 = vand.u32 %v1547, 2147483648
        %v1661 = vor.u32 1.1754944e-38, %v1660
        %v1662 = vsel %vm1659, %v1661, %v1657
        %v1663 = vrcp.pop %v1548
        %v1664 = vmul.f32 %v1548, %v1663
        %v1665 = vsub.f32 1.0, %v1664
        %v1666 = vmul.f32 %v1663, %v1665
        %v1667 = vadd.f32 %v1663, %v1666
        %vm1668 = vweird.f32 %v1548
        %vm1669 = vweird.f32 %v1663
        %vm1670 = vmor %vm1668, %vm1669
        %v1671 = vsel %vm1670, %v1663, %v1667
        %v1672 = vand.u32 2147483647, %v1548
        %vm1673 = vcmp.eq.f32.partialorder %v1672, 8.507059e+37
        %v1674 = vand.u32 %v1548, 2147483648
        %v1675 = vor.u32 1.1754944e-38, %v1674
        %v1676 = vsel %vm1673, %v1675, %v1671
        %v1677 = vrcp.pop %v1549
        %v1678 = vmul.f32 %v1549, %v1677
        %v1679 = vsub.f32 1.0, %v1678
        %v1680 = vmul.f32 %v1677, %v1679
        %v1681 = vadd.f32 %v1677, %v1680
        %vm1682 = vweird.f32 %v1549
        %vm1683 = vweird.f32 %v1677
        %vm1684 = vmor %vm1682, %vm1683
        %v1685 = vsel %vm1684, %v1677, %v1681
        %v1686 = vand.u32 2147483647, %v1549
        %vm1687 = vcmp.eq.f32.partialorder %v1686, 8.507059e+37
        %v1688 = vand.u32 %v1549, 2147483648
        %v1689 = vor.u32 1.1754944e-38, %v1688
        %v1690 = vsel %vm1687, %v1689, %v1685
        %v1691 = vrcp.pop %v1550
        %v1692 = vmul.f32 %v1550, %v1691
        %v1693 = vsub.f32 1.0, %v1692
        %v1694 = vmul.f32 %v1691, %v1693
        %v1695 = vadd.f32 %v1691, %v1694
        %vm1696 = vweird.f32 %v1550
        %vm1697 = vweird.f32 %v1691
        %vm1698 = vmor %vm1696, %vm1697
        %v1699 = vsel %vm1698, %v1691, %v1695
        %v1700 = vand.u32 2147483647, %v1550
        %vm1701 = vcmp.eq.f32.partialorder %v1700, 8.507059e+37
        %v1702 = vand.u32 %v1550, 2147483648
        %v1703 = vor.u32 1.1754944e-38, %v1702
        %v1704 = vsel %vm1701, %v1703, %v1699
        %v1705 = vrcp.pop %v1551
        %v1706 = vmul.f32 %v1551, %v1705
        %v1707 = vsub.f32 1.0, %v1706
        %v1708 = vmul.f32 %v1705, %v1707
        %v1709 = vadd.f32 %v1705, %v1708
        %vm1710 = vweird.f32 %v1551
        %vm1711 = vweird.f32 %v1705
        %vm1712 = vmor %vm1710, %vm1711
        %v1713 = vsel %vm1712, %v1705, %v1709
        %v1714 = vand.u32 2147483647, %v1551
        %vm1715 = vcmp.eq.f32.partialorder %v1714, 8.507059e+37
        %v1716 = vand.u32 %v1551, 2147483648
        %v1717 = vor.u32 1.1754944e-38, %v1716
        %v1718 = vsel %vm1715, %v1717, %v1713
        %v1719 = vrcp.pop %v1552
        %v1720 = vmul.f32 %v1552, %v1719
        %v1721 = vsub.f32 1.0, %v1720
        %v1722 = vmul.f32 %v1719, %v1721
        %v1723 = vadd.f32 %v1719, %v1722
        %vm1724 = vweird.f32 %v1552
        %vm1725 = vweird.f32 %v1719
        %vm1726 = vmor %vm1724, %vm1725
        %v1727 = vsel %vm1726, %v1719, %v1723
        %v1728 = vand.u32 2147483647, %v1552
        %vm1729 = vcmp.eq.f32.partialorder %v1728, 8.507059e+37
        %v1730 = vand.u32 %v1552, 2147483648
        %v1731 = vor.u32 1.1754944e-38, %v1730
        %v1732 = vsel %vm1729, %v1731, %v1727
        %v1733 = vrcp.pop %v1553
        %v1734 = vmul.f32 %v1553, %v1733
        %v1735 = vsub.f32 1.0, %v1734
        %v1736 = vmul.f32 %v1733, %v1735
        %v1737 = vadd.f32 %v1733, %v1736
        %vm1738 = vweird.f32 %v1553
        %vm1739 = vweird.f32 %v1733
        %vm1740 = vmor %vm1738, %vm1739
        %v1741 = vsel %vm1740, %v1733, %v1737
        %v1742 = vand.u32 2147483647, %v1553
        %vm1743 = vcmp.eq.f32.partialorder %v1742, 8.507059e+37
        %v1744 = vand.u32 %v1553, 2147483648
        %v1745 = vor.u32 1.1754944e-38, %v1744
        %v1746 = vsel %vm1743, %v1745, %v1741
        %v1747 = vrcp.pop %v1554
        %v1748 = vmul.f32 %v1554, %v1747
        %v1749 = vsub.f32 1.0, %v1748
        %v1750 = vmul.f32 %v1747, %v1749
        %v1751 = vadd.f32 %v1747, %v1750
        %vm1752 = vweird.f32 %v1554
        %vm1753 = vweird.f32 %v1747
        %vm1754 = vmor %vm1752, %vm1753
        %v1755 = vsel %vm1754, %v1747, %v1751
        %v1756 = vand.u32 2147483647, %v1554
        %vm1757 = vcmp.eq.f32.partialorder %v1756, 8.507059e+37
        %v1758 = vand.u32 %v1554, 2147483648
        %v1759 = vor.u32 1.1754944e-38, %v1758
        %v1760 = vsel %vm1757, %v1759, %v1755
        %v1761 = vrcp.pop %v1555
        %v1762 = vmul.f32 %v1555, %v1761
        %v1763 = vsub.f32 1.0, %v1762
        %v1764 = vmul.f32 %v1761, %v1763
        %v1765 = vadd.f32 %v1761, %v1764
        %vm1766 = vweird.f32 %v1555
        %vm1767 = vweird.f32 %v1761
        %vm1768 = vmor %vm1766, %vm1767
        %v1769 = vsel %vm1768, %v1761, %v1765
        %v1770 = vand.u32 2147483647, %v1555
        %vm1771 = vcmp.eq.f32.partialorder %v1770, 8.507059e+37
        %v1772 = vand.u32 %v1555, 2147483648
        %v1773 = vor.u32 1.1754944e-38, %v1772
        %v1774 = vsel %vm1771, %v1773, %v1769
        %v1775 = vrcp.pop %v1556
        %v1776 = vmul.f32 %v1556, %v1775
        %v1777 = vsub.f32 1.0, %v1776
        %v1778 = vmul.f32 %v1775, %v1777
        %v1779 = vadd.f32 %v1775, %v1778
        %vm1780 = vweird.f32 %v1556
        %vm1781 = vweird.f32 %v1775
        %vm1782 = vmor %vm1780, %vm1781
        %v1783 = vsel %vm1782, %v1775, %v1779
        %v1784 = vand.u32 2147483647, %v1556
        %vm1785 = vcmp.eq.f32.partialorder %v1784, 8.507059e+37
        %v1786 = vand.u32 %v1556, 2147483648
        %v1787 = vor.u32 1.1754944e-38, %v1786
        %v1788 = vsel %vm1785, %v1787, %v1783
        %v1789 = vrcp.pop %v1557
        %v1790 = vmul.f32 %v1557, %v1789
        %v1791 = vsub.f32 1.0, %v1790
        %v1792 = vmul.f32 %v1789, %v1791
        %v1793 = vadd.f32 %v1789, %v1792
        %vm1794 = vweird.f32 %v1557
        %vm1795 = vweird.f32 %v1789
        %vm1796 = vmor %vm1794, %vm1795
        %v1797 = vsel %vm1796, %v1789, %v1793
        %v1798 = vand.u32 2147483647, %v1557
        %vm1799 = vcmp.eq.f32.partialorder %v1798, 8.507059e+37
        %v1800 = vand.u32 %v1557, 2147483648
        %v1801 = vor.u32 1.1754944e-38, %v1800
        %v1802 = vsel %vm1799, %v1801, %v1797
        %v1803 = vrcp.pop %v1558
        %v1804 = vmul.f32 %v1558, %v1803
        %v1805 = vsub.f32 1.0, %v1804
        %v1806 = vmul.f32 %v1803, %v1805
        %v1807 = vadd.f32 %v1803, %v1806
        %vm1808 = vweird.f32 %v1558
        %vm1809 = vweird.f32 %v1803
        %vm1810 = vmor %vm1808, %vm1809
        %v1811 = vsel %vm1810, %v1803, %v1807
        %v1812 = vand.u32 2147483647, %v1558
        %vm1813 = vcmp.eq.f32.partialorder %v1812, 8.507059e+37
        %v1814 = vand.u32 %v1558, 2147483648
        %v1815 = vor.u32 1.1754944e-38, %v1814
        %v1816 = vsel %vm1813, %v1815, %v1811
        %v1817 = vrcp.pop %v1559
        %v1818 = vmul.f32 %v1559, %v1817
        %v1819 = vsub.f32 1.0, %v1818
        %v1820 = vmul.f32 %v1817, %v1819
        %v1821 = vadd.f32 %v1817, %v1820
        %vm1822 = vweird.f32 %v1559
        %vm1823 = vweird.f32 %v1817
        %vm1824 = vmor %vm1822, %vm1823
        %v1825 = vsel %vm1824, %v1817, %v1821
        %v1826 = vand.u32 2147483647, %v1559
        %vm1827 = vcmp.eq.f32.partialorder %v1826, 8.507059e+37
        %v1828 = vand.u32 %v1559, 2147483648
        %v1829 = vor.u32 1.1754944e-38, %v1828
        %v1830 = vsel %vm1827, %v1829, %v1825
        %v1831 = vrcp.pop %v1560
        %v1832 = vmul.f32 %v1560, %v1831
        %v1833 = vsub.f32 1.0, %v1832
        %v1834 = vmul.f32 %v1831, %v1833
        %v1835 = vadd.f32 %v1831, %v1834
        %vm1836 = vweird.f32 %v1560
        %vm1837 = vweird.f32 %v1831
        %vm1838 = vmor %vm1836, %vm1837
        %v1839 = vsel %vm1838, %v1831, %v1835
        %v1840 = vand.u32 2147483647, %v1560
        %vm1841 = vcmp.eq.f32.partialorder %v1840, 8.507059e+37
        %v1842 = vand.u32 %v1560, 2147483648
        %v1843 = vor.u32 1.1754944e-38, %v1842
        %v1844 = vsel %vm1841, %v1843, %v1839
        %v1845 = vrcp.pop %v1561
        %v1846 = vmul.f32 %v1561, %v1845
        %v1847 = vsub.f32 1.0, %v1846
        %v1848 = vmul.f32 %v1845, %v1847
        %v1849 = vadd.f32 %v1845, %v1848
        %vm1850 = vweird.f32 %v1561
        %vm1851 = vweird.f32 %v1845
        %vm1852 = vmor %vm1850, %vm1851
        %v1853 = vsel %vm1852, %v1845, %v1849
        %v1854 = vand.u32 2147483647, %v1561
        %vm1855 = vcmp.eq.f32.partialorder %v1854, 8.507059e+37
        %v1856 = vand.u32 %v1561, 2147483648
        %v1857 = vor.u32 1.1754944e-38, %v1856
        %v1858 = vsel %vm1855, %v1857, %v1853
        %v1859 = vrcp.pop %v1562
        %v1860 = vmul.f32 %v1562, %v1859
        %v1861 = vsub.f32 1.0, %v1860
        %v1862 = vmul.f32 %v1859, %v1861
        %v1863 = vadd.f32 %v1859, %v1862
        %vm1864 = vweird.f32 %v1562
        %vm1865 = vweird.f32 %v1859
        %vm1866 = vmor %vm1864, %vm1865
        %v1867 = vsel %vm1866, %v1859, %v1863
        %v1868 = vand.u32 2147483647, %v1562
        %vm1869 = vcmp.eq.f32.partialorder %v1868, 8.507059e+37
        %v1870 = vand.u32 %v1562, 2147483648
        %v1871 = vor.u32 1.1754944e-38, %v1870
        %v1872 = vsel %vm1869, %v1871, %v1867
        %v1873 = vrcp.pop %v1563
        %v1874 = vmul.f32 %v1563, %v1873
        %v1875 = vsub.f32 1.0, %v1874
        %v1876 = vmul.f32 %v1873, %v1875
        %v1877 = vadd.f32 %v1873, %v1876
        %vm1878 = vweird.f32 %v1563
        %vm1879 = vweird.f32 %v1873
        %vm1880 = vmor %vm1878, %vm1879
        %v1881 = vsel %vm1880, %v1873, %v1877
        %v1882 = vand.u32 2147483647, %v1563
        %vm1883 = vcmp.eq.f32.partialorder %v1882, 8.507059e+37
        %v1884 = vand.u32 %v1563, 2147483648
        %v1885 = vor.u32 1.1754944e-38, %v1884
        %v1886 = vsel %vm1883, %v1885, %v1881
        %v1887 = vrcp.pop %v1564
        %v1888 = vmul.f32 %v1564, %v1887
        %v1889 = vsub.f32 1.0, %v1888
        %v1890 = vmul.f32 %v1887, %v1889
        %v1891 = vadd.f32 %v1887, %v1890
        %vm1892 = vweird.f32 %v1564
        %vm1893 = vweird.f32 %v1887
        %vm1894 = vmor %vm1892, %vm1893
        %v1895 = vsel %vm1894, %v1887, %v1891
        %v1896 = vand.u32 2147483647, %v1564
        %vm1897 = vcmp.eq.f32.partialorder %v1896, 8.507059e+37
        %v1898 = vand.u32 %v1564, 2147483648
        %v1899 = vor.u32 1.1754944e-38, %v1898
        %v1900 = vsel %vm1897, %v1899, %v1895
        %v1901 = vrcp.pop %v1565
        %v1902 = vmul.f32 %v1565, %v1901
        %v1903 = vsub.f32 1.0, %v1902
        %v1904 = vmul.f32 %v1901, %v1903
        %v1905 = vadd.f32 %v1901, %v1904
        %vm1906 = vweird.f32 %v1565
        %vm1907 = vweird.f32 %v1901
        %vm1908 = vmor %vm1906, %vm1907
        %v1909 = vsel %vm1908, %v1901, %v1905
        %v1910 = vand.u32 2147483647, %v1565
        %vm1911 = vcmp.eq.f32.partialorder %v1910, 8.507059e+37
        %v1912 = vand.u32 %v1565, 2147483648
        %v1913 = vor.u32 1.1754944e-38, %v1912
        %v1914 = vsel %vm1911, %v1913, %v1909
        %v1915 = vrcp.pop %v1566
        %v1916 = vmul.f32 %v1566, %v1915
        %v1917 = vsub.f32 1.0, %v1916
        %v1918 = vmul.f32 %v1915, %v1917
        %v1919 = vadd.f32 %v1915, %v1918
        %vm1920 = vweird.f32 %v1566
        %vm1921 = vweird.f32 %v1915
        %vm1922 = vmor %vm1920, %vm1921
        %v1923 = vsel %vm1922, %v1915, %v1919
        %v1924 = vand.u32 2147483647, %v1566
        %vm1925 = vcmp.eq.f32.partialorder %v1924, 8.507059e+37
        %v1926 = vand.u32 %v1566, 2147483648
        %v1927 = vor.u32 1.1754944e-38, %v1926
        %v1928 = vsel %vm1925, %v1927, %v1923
        %v1929 = vrcp.pop %v1567
        %v1930 = vmul.f32 %v1567, %v1929
        %v1931 = vsub.f32 1.0, %v1930
        %v1932 = vmul.f32 %v1929, %v1931
        %v1933 = vadd.f32 %v1929, %v1932
        %vm1934 = vweird.f32 %v1567
        %vm1935 = vweird.f32 %v1929
        %vm1936 = vmor %vm1934, %vm1935
        %v1937 = vsel %vm1936, %v1929, %v1933
        %v1938 = vand.u32 2147483647, %v1567
        %vm1939 = vcmp.eq.f32.partialorder %v1938, 8.507059e+37
        %v1940 = vand.u32 %v1567, 2147483648
        %v1941 = vor.u32 1.1754944e-38, %v1940
        %v1942 = vsel %vm1939, %v1941, %v1937
        %v1943 = vrcp.pop %v1568
        %v1944 = vmul.f32 %v1568, %v1943
        %v1945 = vsub.f32 1.0, %v1944
        %v1946 = vmul.f32 %v1943, %v1945
        %v1947 = vadd.f32 %v1943, %v1946
        %vm1948 = vweird.f32 %v1568
        %vm1949 = vweird.f32 %v1943
        %vm1950 = vmor %vm1948, %vm1949
        %v1951 = vsel %vm1950, %v1943, %v1947
        %v1952 = vand.u32 2147483647, %v1568
        %vm1953 = vcmp.eq.f32.partialorder %v1952, 8.507059e+37
        %v1954 = vand.u32 %v1568, 2147483648
        %v1955 = vor.u32 1.1754944e-38, %v1954
        %v1956 = vsel %vm1953, %v1955, %v1951
        %v1957 = vrcp.pop %v1569
        %v1958 = vmul.f32 %v1569, %v1957
        %v1959 = vsub.f32 1.0, %v1958
        %v1960 = vmul.f32 %v1957, %v1959
        %v1961 = vadd.f32 %v1957, %v1960
        %vm1962 = vweird.f32 %v1569
        %vm1963 = vweird.f32 %v1957
        %vm1964 = vmor %vm1962, %vm1963
        %v1965 = vsel %vm1964, %v1957, %v1961
        %v1966 = vand.u32 2147483647, %v1569
        %vm1967 = vcmp.eq.f32.partialorder %v1966, 8.507059e+37
        %v1968 = vand.u32 %v1569, 2147483648
        %v1969 = vor.u32 1.1754944e-38, %v1968
        %v1970 = vsel %vm1967, %v1969, %v1965
        %v1971 = vrcp.pop %v1570
        %v1972 = vmul.f32 %v1570, %v1971
        %v1973 = vsub.f32 1.0, %v1972
        %v1974 = vmul.f32 %v1971, %v1973
        %v1975 = vadd.f32 %v1971, %v1974
        %vm1976 = vweird.f32 %v1570
        %vm1977 = vweird.f32 %v1971
        %vm1978 = vmor %vm1976, %vm1977
        %v1979 = vsel %vm1978, %v1971, %v1975
        %v1980 = vand.u32 2147483647, %v1570
        %vm1981 = vcmp.eq.f32.partialorder %v1980, 8.507059e+37
        %v1982 = vand.u32 %v1570, 2147483648
        %v1983 = vor.u32 1.1754944e-38, %v1982
        %v1984 = vsel %vm1981, %v1983, %v1979
        %v1985 = vrcp.pop %v1571
        %v1986 = vmul.f32 %v1571, %v1985
        %v1987 = vsub.f32 1.0, %v1986
        %v1988 = vmul.f32 %v1985, %v1987
        %v1989 = vadd.f32 %v1985, %v1988
        %vm1990 = vweird.f32 %v1571
        %vm1991 = vweird.f32 %v1985
        %vm1992 = vmor %vm1990, %vm1991
        %v1993 = vsel %vm1992, %v1985, %v1989
        %v1994 = vand.u32 2147483647, %v1571
        %vm1995 = vcmp.eq.f32.partialorder %v1994, 8.507059e+37
        %v1996 = vand.u32 %v1571, 2147483648
        %v1997 = vor.u32 1.1754944e-38, %v1996
        %v1998 = vsel %vm1995, %v1997, %v1993
        %v1999 = vrcp.pop %v1572
        %v2000 = vmul.f32 %v1572, %v1999
        %v2001 = vsub.f32 1.0, %v2000
        %v2002 = vmul.f32 %v1999, %v2001
        %v2003 = vadd.f32 %v1999, %v2002
        %vm2004 = vweird.f32 %v1572
        %vm2005 = vweird.f32 %v1999
        %vm2006 = vmor %vm2004, %vm2005
        %v2007 = vsel %vm2006, %v1999, %v2003
        %v2008 = vand.u32 2147483647, %v1572
        %vm2009 = vcmp.eq.f32.partialorder %v2008, 8.507059e+37
        %v2010 = vand.u32 %v1572, 2147483648
        %v2011 = vor.u32 1.1754944e-38, %v2010
        %v2012 = vsel %vm2009, %v2011, %v2007
        %v2013 = vrcp.pop %v1573
        %v2014 = vmul.f32 %v1573, %v2013
        %v2015 = vsub.f32 1.0, %v2014
        %v2016 = vmul.f32 %v2013, %v2015
        %v2017 = vadd.f32 %v2013, %v2016
        %vm2018 = vweird.f32 %v1573
        %vm2019 = vweird.f32 %v2013
        %vm2020 = vmor %vm2018, %vm2019
        %v2021 = vsel %vm2020, %v2013, %v2017
        %v2022 = vand.u32 2147483647, %v1573
        %vm2023 = vcmp.eq.f32.partialorder %v2022, 8.507059e+37
        %v2024 = vand.u32 %v1573, 2147483648
        %v2025 = vor.u32 1.1754944e-38, %v2024
        %v2026 = vsel %vm2023, %v2025, %v2021
        %v2027 = vrcp.pop %v1574
        %v2028 = vmul.f32 %v1574, %v2027
        %v2029 = vsub.f32 1.0, %v2028
        %v2030 = vmul.f32 %v2027, %v2029
        %v2031 = vadd.f32 %v2027, %v2030
        %vm2032 = vweird.f32 %v1574
        %vm2033 = vweird.f32 %v2027
        %vm2034 = vmor %vm2032, %vm2033
        %v2035 = vsel %vm2034, %v2027, %v2031
        %v2036 = vand.u32 2147483647, %v1574
        %vm2037 = vcmp.eq.f32.partialorder %v2036, 8.507059e+37
        %v2038 = vand.u32 %v1574, 2147483648
        %v2039 = vor.u32 1.1754944e-38, %v2038
        %v2040 = vsel %vm2037, %v2039, %v2035
        %v2041 = vrcp.pop %v1575
        %v2042 = vmul.f32 %v1575, %v2041
        %v2043 = vsub.f32 1.0, %v2042
        %v2044 = vmul.f32 %v2041, %v2043
        %v2045 = vadd.f32 %v2041, %v2044
        %vm2046 = vweird.f32 %v1575
        %vm2047 = vweird.f32 %v2041
        %vm2048 = vmor %vm2046, %vm2047
        %v2049 = vsel %vm2048, %v2041, %v2045
        %v2050 = vand.u32 2147483647, %v1575
        %vm2051 = vcmp.eq.f32.partialorder %v2050, 8.507059e+37
        %v2052 = vand.u32 %v1575, 2147483648
        %v2053 = vor.u32 1.1754944e-38, %v2052
        %v2054 = vsel %vm2051, %v2053, %v2049
        %v2055 = vrcp.pop %v1576
        %v2056 = vmul.f32 %v1576, %v2055
        %v2057 = vsub.f32 1.0, %v2056
        %v2058 = vmul.f32 %v2055, %v2057
        %v2059 = vadd.f32 %v2055, %v2058
        %vm2060 = vweird.f32 %v1576
        %vm2061 = vweird.f32 %v2055
        %vm2062 = vmor %vm2060, %vm2061
        %v2063 = vsel %vm2062, %v2055, %v2059
        %v2064 = vand.u32 2147483647, %v1576
        %vm2065 = vcmp.eq.f32.partialorder %v2064, 8.507059e+37
        %v2066 = vand.u32 %v1576, 2147483648
        %v2067 = vor.u32 1.1754944e-38, %v2066
        %v2068 = vsel %vm2065, %v2067, %v2063
        %v2069 = vrcp.pop %v1577
        %v2070 = vmul.f32 %v1577, %v2069
        %v2071 = vsub.f32 1.0, %v2070
        %v2072 = vmul.f32 %v2069, %v2071
        %v2073 = vadd.f32 %v2069, %v2072
        %vm2074 = vweird.f32 %v1577
        %vm2075 = vweird.f32 %v2069
        %vm2076 = vmor %vm2074, %vm2075
        %v2077 = vsel %vm2076, %v2069, %v2073
        %v2078 = vand.u32 2147483647, %v1577
        %vm2079 = vcmp.eq.f32.partialorder %v2078, 8.507059e+37
        %v2080 = vand.u32 %v1577, 2147483648
        %v2081 = vor.u32 1.1754944e-38, %v2080
        %v2082 = vsel %vm2079, %v2081, %v2077
        %v2083 = vrcp.pop %v1578
        %v2084 = vmul.f32 %v1578, %v2083
        %v2085 = vsub.f32 1.0, %v2084
        %v2086 = vmul.f32 %v2083, %v2085
        %v2087 = vadd.f32 %v2083, %v2086
        %vm2088 = vweird.f32 %v1578
        %vm2089 = vweird.f32 %v2083
        %vm2090 = vmor %vm2088, %vm2089
        %v2091 = vsel %vm2090, %v2083, %v2087
        %v2092 = vand.u32 2147483647, %v1578
        %vm2093 = vcmp.eq.f32.partialorder %v2092, 8.507059e+37
        %v2094 = vand.u32 %v1578, 2147483648
        %v2095 = vor.u32 1.1754944e-38, %v2094
        %v2096 = vsel %vm2093, %v2095, %v2091
        %v2097 = vrcp.pop %v1579
        %v2098 = vmul.f32 %v1579, %v2097
        %v2099 = vsub.f32 1.0, %v2098
        %v2100 = vmul.f32 %v2097, %v2099
        %v2101 = vadd.f32 %v2097, %v2100
        %vm2102 = vweird.f32 %v1579
        %vm2103 = vweird.f32 %v2097
        %vm2104 = vmor %vm2102, %vm2103
        %v2105 = vsel %vm2104, %v2097, %v2101
        %v2106 = vand.u32 2147483647, %v1579
        %vm2107 = vcmp.eq.f32.partialorder %v2106, 8.507059e+37
        %v2108 = vand.u32 %v1579, 2147483648
        %v2109 = vor.u32 1.1754944e-38, %v2108
        %v2110 = vsel %vm2107, %v2109, %v2105
        %v2111 = vrcp.pop %v1580
        %v2112 = vmul.f32 %v1580, %v2111
        %v2113 = vsub.f32 1.0, %v2112
        %v2114 = vmul.f32 %v2111, %v2113
        %v2115 = vadd.f32 %v2111, %v2114
        %vm2116 = vweird.f32 %v1580
        %vm2117 = vweird.f32 %v2111
        %vm2118 = vmor %vm2116, %vm2117
        %v2119 = vsel %vm2118, %v2111, %v2115
        %v2120 = vand.u32 2147483647, %v1580
        %vm2121 = vcmp.eq.f32.partialorder %v2120, 8.507059e+37
        %v2122 = vand.u32 %v1580, 2147483648
        %v2123 = vor.u32 1.1754944e-38, %v2122
        %v2124 = vsel %vm2121, %v2123, %v2119
        %v2125 = vrcp.pop %v1581
        %v2126 = vmul.f32 %v1581, %v2125
        %v2127 = vsub.f32 1.0, %v2126
        %v2128 = vmul.f32 %v2125, %v2127
        %v2129 = vadd.f32 %v2125, %v2128
        %vm2130 = vweird.f32 %v1581
        %vm2131 = vweird.f32 %v2125
        %vm2132 = vmor %vm2130, %vm2131
        %v2133 = vsel %vm2132, %v2125, %v2129
        %v2134 = vand.u32 2147483647, %v1581
        %vm2135 = vcmp.eq.f32.partialorder %v2134, 8.507059e+37
        %v2136 = vand.u32 %v1581, 2147483648
        %v2137 = vor.u32 1.1754944e-38, %v2136
        %v2138 = vsel %vm2135, %v2137, %v2133
        %v2139 = vrcp.pop %v1582
        %v2140 = vmul.f32 %v1582, %v2139
        %v2141 = vsub.f32 1.0, %v2140
        %v2142 = vmul.f32 %v2139, %v2141
        %v2143 = vadd.f32 %v2139, %v2142
        %vm2144 = vweird.f32 %v1582
        %vm2145 = vweird.f32 %v2139
        %vm2146 = vmor %vm2144, %vm2145
        %v2147 = vsel %vm2146, %v2139, %v2143
        %v2148 = vand.u32 2147483647, %v1582
        %vm2149 = vcmp.eq.f32.partialorder %v2148, 8.507059e+37
        %v2150 = vand.u32 %v1582, 2147483648
        %v2151 = vor.u32 1.1754944e-38, %v2150
        %v2152 = vsel %vm2149, %v2151, %v2147
        %v2153 = vrcp.pop %v1583
        %v2154 = vmul.f32 %v1583, %v2153
        %v2155 = vsub.f32 1.0, %v2154
        %v2156 = vmul.f32 %v2153, %v2155
        %v2157 = vadd.f32 %v2153, %v2156
        %vm2158 = vweird.f32 %v1583
        %vm2159 = vweird.f32 %v2153
        %vm2160 = vmor %vm2158, %vm2159
        %v2161 = vsel %vm2160, %v2153, %v2157
        %v2162 = vand.u32 2147483647, %v1583
        %vm2163 = vcmp.eq.f32.partialorder %v2162, 8.507059e+37
        %v2164 = vand.u32 %v1583, 2147483648
        %v2165 = vor.u32 1.1754944e-38, %v2164
        %v2166 = vsel %vm2163, %v2165, %v2161
        %v2167 = vrcp.pop %v1584
        %v2168 = vmul.f32 %v1584, %v2167
        %v2169 = vsub.f32 1.0, %v2168
        %v2170 = vmul.f32 %v2167, %v2169
        %v2171 = vadd.f32 %v2167, %v2170
        %vm2172 = vweird.f32 %v1584
        %vm2173 = vweird.f32 %v2167
        %vm2174 = vmor %vm2172, %vm2173
        %v2175 = vsel %vm2174, %v2167, %v2171
        %v2176 = vand.u32 2147483647, %v1584
        %vm2177 = vcmp.eq.f32.partialorder %v2176, 8.507059e+37
        %v2178 = vand.u32 %v1584, 2147483648
        %v2179 = vor.u32 1.1754944e-38, %v2178
        %v2180 = vsel %vm2177, %v2179, %v2175
        %v2181 = vrcp.pop %v1585
        %v2182 = vmul.f32 %v1585, %v2181
        %v2183 = vsub.f32 1.0, %v2182
        %v2184 = vmul.f32 %v2181, %v2183
        %v2185 = vadd.f32 %v2181, %v2184
        %vm2186 = vweird.f32 %v1585
        %vm2187 = vweird.f32 %v2181
        %vm2188 = vmor %vm2186, %vm2187
        %v2189 = vsel %vm2188, %v2181, %v2185
        %v2190 = vand.u32 2147483647, %v1585
        %vm2191 = vcmp.eq.f32.partialorder %v2190, 8.507059e+37
        %v2192 = vand.u32 %v1585, 2147483648
        %v2193 = vor.u32 1.1754944e-38, %v2192
        %v2194 = vsel %vm2191, %v2193, %v2189
        %v2195 = vrcp.pop %v1586
        %v2196 = vmul.f32 %v1586, %v2195
        %v2197 = vsub.f32 1.0, %v2196
        %v2198 = vmul.f32 %v2195, %v2197
        %v2199 = vadd.f32 %v2195, %v2198
        %vm2200 = vweird.f32 %v1586
        %vm2201 = vweird.f32 %v2195
        %vm2202 = vmor %vm2200, %vm2201
        %v2203 = vsel %vm2202, %v2195, %v2199
        %v2204 = vand.u32 2147483647, %v1586
        %vm2205 = vcmp.eq.f32.partialorder %v2204, 8.507059e+37
        %v2206 = vand.u32 %v1586, 2147483648
        %v2207 = vor.u32 1.1754944e-38, %v2206
        %v2208 = vsel %vm2205, %v2207, %v2203
        %v2209 = vrcp.pop %v1587
        %v2210 = vmul.f32 %v1587, %v2209
        %v2211 = vsub.f32 1.0, %v2210
        %v2212 = vmul.f32 %v2209, %v2211
        %v2213 = vadd.f32 %v2209, %v2212
        %vm2214 = vweird.f32 %v1587
        %vm2215 = vweird.f32 %v2209
        %vm2216 = vmor %vm2214, %vm2215
        %v2217 = vsel %vm2216, %v2209, %v2213
        %v2218 = vand.u32 2147483647, %v1587
        %vm2219 = vcmp.eq.f32.partialorder %v2218, 8.507059e+37
        %v2220 = vand.u32 %v1587, 2147483648
        %v2221 = vor.u32 1.1754944e-38, %v2220
        %v2222 = vsel %vm2219, %v2221, %v2217
        %v2223 = vrcp.pop %v1588
        %v2224 = vmul.f32 %v1588, %v2223
        %v2225 = vsub.f32 1.0, %v2224
        %v2226 = vmul.f32 %v2223, %v2225
        %v2227 = vadd.f32 %v2223, %v2226
        %vm2228 = vweird.f32 %v1588
        %vm2229 = vweird.f32 %v2223
        %vm2230 = vmor %vm2228, %vm2229
        %v2231 = vsel %vm2230, %v2223, %v2227
        %v2232 = vand.u32 2147483647, %v1588
        %vm2233 = vcmp.eq.f32.partialorder %v2232, 8.507059e+37
        %v2234 = vand.u32 %v1588, 2147483648
        %v2235 = vor.u32 1.1754944e-38, %v2234
        %v2236 = vsel %vm2233, %v2235, %v2231
        %v2237 = vrcp.pop %v1589
        %v2238 = vmul.f32 %v1589, %v2237
        %v2239 = vsub.f32 1.0, %v2238
        %v2240 = vmul.f32 %v2237, %v2239
        %v2241 = vadd.f32 %v2237, %v2240
        %vm2242 = vweird.f32 %v1589
        %vm2243 = vweird.f32 %v2237
        %vm2244 = vmor %vm2242, %vm2243
        %v2245 = vsel %vm2244, %v2237, %v2241
        %v2246 = vand.u32 2147483647, %v1589
        %vm2247 = vcmp.eq.f32.partialorder %v2246, 8.507059e+37
        %v2248 = vand.u32 %v1589, 2147483648
        %v2249 = vor.u32 1.1754944e-38, %v2248
        %v2250 = vsel %vm2247, %v2249, %v2245
        %v2251 = vrcp.pop %v1590
        %v2252 = vmul.f32 %v1590, %v2251
        %v2253 = vsub.f32 1.0, %v2252
        %v2254 = vmul.f32 %v2251, %v2253
        %v2255 = vadd.f32 %v2251, %v2254
        %vm2256 = vweird.f32 %v1590
        %vm2257 = vweird.f32 %v2251
        %vm2258 = vmor %vm2256, %vm2257
        %v2259 = vsel %vm2258, %v2251, %v2255
        %v2260 = vand.u32 2147483647, %v1590
        %vm2261 = vcmp.eq.f32.partialorder %v2260, 8.507059e+37
        %v2262 = vand.u32 %v1590, 2147483648
        %v2263 = vor.u32 1.1754944e-38, %v2262
        %v2264 = vsel %vm2261, %v2263, %v2259
        %v2265 = vrcp.pop %v1591
        %v2266 = vmul.f32 %v1591, %v2265
        %v2267 = vsub.f32 1.0, %v2266
        %v2268 = vmul.f32 %v2265, %v2267
        %v2269 = vadd.f32 %v2265, %v2268
        %vm2270 = vweird.f32 %v1591
        %vm2271 = vweird.f32 %v2265
        %vm2272 = vmor %vm2270, %vm2271
        %v2273 = vsel %vm2272, %v2265, %v2269
        %v2274 = vand.u32 2147483647, %v1591
        %vm2275 = vcmp.eq.f32.partialorder %v2274, 8.507059e+37
        %v2276 = vand.u32 %v1591, 2147483648
        %v2277 = vor.u32 1.1754944e-38, %v2276
        %v2278 = vsel %vm2275, %v2277, %v2273
        %v2279 = vrcp.pop %v1592
        %v2280 = vmul.f32 %v1592, %v2279
        %v2281 = vsub.f32 1.0, %v2280
        %v2282 = vmul.f32 %v2279, %v2281
        %v2283 = vadd.f32 %v2279, %v2282
        %vm2284 = vweird.f32 %v1592
        %vm2285 = vweird.f32 %v2279
        %vm2286 = vmor %vm2284, %vm2285
        %v2287 = vsel %vm2286, %v2279, %v2283
        %v2288 = vand.u32 2147483647, %v1592
        %vm2289 = vcmp.eq.f32.partialorder %v2288, 8.507059e+37
        %v2290 = vand.u32 %v1592, 2147483648
        %v2291 = vor.u32 1.1754944e-38, %v2290
        %v2292 = vsel %vm2289, %v2291, %v2287
        %v2293 = vrcp.pop %v1593
        %v2294 = vmul.f32 %v1593, %v2293
        %v2295 = vsub.f32 1.0, %v2294
        %v2296 = vmul.f32 %v2293, %v2295
        %v2297 = vadd.f32 %v2293, %v2296
        %vm2298 = vweird.f32 %v1593
        %vm2299 = vweird.f32 %v2293
        %vm2300 = vmor %vm2298, %vm2299
        %v2301 = vsel %vm2300, %v2293, %v2297
        %v2302 = vand.u32 2147483647, %v1593
        %vm2303 = vcmp.eq.f32.partialorder %v2302, 8.507059e+37
        %v2304 = vand.u32 %v1593, 2147483648
        %v2305 = vor.u32 1.1754944e-38, %v2304
        %v2306 = vsel %vm2303, %v2305, %v2301
        %v2307 = vrcp.pop %v1594
        %v2308 = vmul.f32 %v1594, %v2307
        %v2309 = vsub.f32 1.0, %v2308
        %v2310 = vmul.f32 %v2307, %v2309
        %v2311 = vadd.f32 %v2307, %v2310
        %vm2312 = vweird.f32 %v1594
        %vm2313 = vweird.f32 %v2307
        %vm2314 = vmor %vm2312, %vm2313
        %v2315 = vsel %vm2314, %v2307, %v2311
        %v2316 = vand.u32 2147483647, %v1594
        %vm2317 = vcmp.eq.f32.partialorder %v2316, 8.507059e+37
        %v2318 = vand.u32 %v1594, 2147483648
        %v2319 = vor.u32 1.1754944e-38, %v2318
        %v2320 = vsel %vm2317, %v2319, %v2315
        %v2321 = vrcp.pop %v1595
        %v2322 = vmul.f32 %v1595, %v2321
        %v2323 = vsub.f32 1.0, %v2322
        %v2324 = vmul.f32 %v2321, %v2323
        %v2325 = vadd.f32 %v2321, %v2324
        %vm2326 = vweird.f32 %v1595
        %vm2327 = vweird.f32 %v2321
        %vm2328 = vmor %vm2326, %vm2327
        %v2329 = vsel %vm2328, %v2321, %v2325
        %v2330 = vand.u32 2147483647, %v1595
        %vm2331 = vcmp.eq.f32.partialorder %v2330, 8.507059e+37
        %v2332 = vand.u32 %v1595, 2147483648
        %v2333 = vor.u32 1.1754944e-38, %v2332
        %v2334 = vsel %vm2331, %v2333, %v2329
        %v2335 = vrcp.pop %v1596
        %v2336 = vmul.f32 %v1596, %v2335
        %v2337 = vsub.f32 1.0, %v2336
        %v2338 = vmul.f32 %v2335, %v2337
        %v2339 = vadd.f32 %v2335, %v2338
        %vm2340 = vweird.f32 %v1596
        %vm2341 = vweird.f32 %v2335
        %vm2342 = vmor %vm2340, %vm2341
        %v2343 = vsel %vm2342, %v2335, %v2339
        %v2344 = vand.u32 2147483647, %v1596
        %vm2345 = vcmp.eq.f32.partialorder %v2344, 8.507059e+37
        %v2346 = vand.u32 %v1596, 2147483648
        %v2347 = vor.u32 1.1754944e-38, %v2346
        %v2348 = vsel %vm2345, %v2347, %v2343
        %v2349 = vrcp.pop %v1597
        %v2350 = vmul.f32 %v1597, %v2349
        %v2351 = vsub.f32 1.0, %v2350
        %v2352 = vmul.f32 %v2349, %v2351
        %v2353 = vadd.f32 %v2349, %v2352
        %vm2354 = vweird.f32 %v1597
        %vm2355 = vweird.f32 %v2349
        %vm2356 = vmor %vm2354, %vm2355
        %v2357 = vsel %vm2356, %v2349, %v2353
        %v2358 = vand.u32 2147483647, %v1597
        %vm2359 = vcmp.eq.f32.partialorder %v2358, 8.507059e+37
        %v2360 = vand.u32 %v1597, 2147483648
        %v2361 = vor.u32 1.1754944e-38, %v2360
        %v2362 = vsel %vm2359, %v2361, %v2357
        %v2363 = vrcp.pop %v1598
        %v2364 = vmul.f32 %v1598, %v2363
        %v2365 = vsub.f32 1.0, %v2364
        %v2366 = vmul.f32 %v2363, %v2365
        %v2367 = vadd.f32 %v2363, %v2366
        %vm2368 = vweird.f32 %v1598
        %vm2369 = vweird.f32 %v2363
        %vm2370 = vmor %vm2368, %vm2369
        %v2371 = vsel %vm2370, %v2363, %v2367
        %v2372 = vand.u32 2147483647, %v1598
        %vm2373 = vcmp.eq.f32.partialorder %v2372, 8.507059e+37
        %v2374 = vand.u32 %v1598, 2147483648
        %v2375 = vor.u32 1.1754944e-38, %v2374
        %v2376 = vsel %vm2373, %v2375, %v2371
        %v2377 = vrcp.pop %v1599
        %v2378 = vmul.f32 %v1599, %v2377
        %v2379 = vsub.f32 1.0, %v2378
        %v2380 = vmul.f32 %v2377, %v2379
        %v2381 = vadd.f32 %v2377, %v2380
        %vm2382 = vweird.f32 %v1599
        %vm2383 = vweird.f32 %v2377
        %vm2384 = vmor %vm2382, %vm2383
        %v2385 = vsel %vm2384, %v2377, %v2381
        %v2386 = vand.u32 2147483647, %v1599
        %vm2387 = vcmp.eq.f32.partialorder %v2386, 8.507059e+37
        %v2388 = vand.u32 %v1599, 2147483648
        %v2389 = vor.u32 1.1754944e-38, %v2388
        %v2390 = vsel %vm2387, %v2389, %v2385
        %v2391 = vrcp.pop %v1600
        %v2392 = vmul.f32 %v1600, %v2391
        %v2393 = vsub.f32 1.0, %v2392
        %v2394 = vmul.f32 %v2391, %v2393
        %v2395 = vadd.f32 %v2391, %v2394
        %vm2396 = vweird.f32 %v1600
        %vm2397 = vweird.f32 %v2391
        %vm2398 = vmor %vm2396, %vm2397
        %v2399 = vsel %vm2398, %v2391, %v2395
        %v2400 = vand.u32 2147483647, %v1600
        %vm2401 = vcmp.eq.f32.partialorder %v2400, 8.507059e+37
        %v2402 = vand.u32 %v1600, 2147483648
        %v2403 = vor.u32 1.1754944e-38, %v2402
        %v2404 = vsel %vm2401, %v2403, %v2399
        %v2405 = vrcp.pop %v1601
        %v2406 = vmul.f32 %v1601, %v2405
        %v2407 = vsub.f32 1.0, %v2406
        %v2408 = vmul.f32 %v2405, %v2407
        %v2409 = vadd.f32 %v2405, %v2408
        %vm2410 = vweird.f32 %v1601
        %vm2411 = vweird.f32 %v2405
        %vm2412 = vmor %vm2410, %vm2411
        %v2413 = vsel %vm2412, %v2405, %v2409
        %v2414 = vand.u32 2147483647, %v1601
        %vm2415 = vcmp.eq.f32.partialorder %v2414, 8.507059e+37
        %v2416 = vand.u32 %v1601, 2147483648
        %v2417 = vor.u32 1.1754944e-38, %v2416
        %v2418 = vsel %vm2415, %v2417, %v2413
        %v2419 = vrcp.pop %v1602
        %v2420 = vmul.f32 %v1602, %v2419
        %v2421 = vsub.f32 1.0, %v2420
        %v2422 = vmul.f32 %v2419, %v2421
        %v2423 = vadd.f32 %v2419, %v2422
        %vm2424 = vweird.f32 %v1602
        %vm2425 = vweird.f32 %v2419
        %vm2426 = vmor %vm2424, %vm2425
        %v2427 = vsel %vm2426, %v2419, %v2423
        %v2428 = vand.u32 2147483647, %v1602
        %vm2429 = vcmp.eq.f32.partialorder %v2428, 8.507059e+37
        %v2430 = vand.u32 %v1602, 2147483648
        %v2431 = vor.u32 1.1754944e-38, %v2430
        %v2432 = vsel %vm2429, %v2431, %v2427
        %v2433 = vrcp.pop %v1603
        %v2434 = vmul.f32 %v1603, %v2433
        %v2435 = vsub.f32 1.0, %v2434
        %v2436 = vmul.f32 %v2433, %v2435
        %v2437 = vadd.f32 %v2433, %v2436
        %vm2438 = vweird.f32 %v1603
        %vm2439 = vweird.f32 %v2433
        %vm2440 = vmor %vm2438, %vm2439
        %v2441 = vsel %vm2440, %v2433, %v2437
        %v2442 = vand.u32 2147483647, %v1603
        %vm2443 = vcmp.eq.f32.partialorder %v2442, 8.507059e+37
        %v2444 = vand.u32 %v1603, 2147483648
        %v2445 = vor.u32 1.1754944e-38, %v2444
        %v2446 = vsel %vm2443, %v2445, %v2441
        %v2447 = vrcp.pop %v1604
        %v2448 = vmul.f32 %v1604, %v2447
        %v2449 = vsub.f32 1.0, %v2448
        %v2450 = vmul.f32 %v2447, %v2449
        %v2451 = vadd.f32 %v2447, %v2450
        %vm2452 = vweird.f32 %v1604
        %vm2453 = vweird.f32 %v2447
        %vm2454 = vmor %vm2452, %vm2453
        %v2455 = vsel %vm2454, %v2447, %v2451
        %v2456 = vand.u32 2147483647, %v1604
        %vm2457 = vcmp.eq.f32.partialorder %v2456, 8.507059e+37
        %v2458 = vand.u32 %v1604, 2147483648
        %v2459 = vor.u32 1.1754944e-38, %v2458
        %v2460 = vsel %vm2457, %v2459, %v2455
        %v2461 = vrcp.pop %v1605
        %v2462 = vmul.f32 %v1605, %v2461
        %v2463 = vsub.f32 1.0, %v2462
        %v2464 = vmul.f32 %v2461, %v2463
        %v2465 = vadd.f32 %v2461, %v2464
        %vm2466 = vweird.f32 %v1605
        %vm2467 = vweird.f32 %v2461
        %vm2468 = vmor %vm2466, %vm2467
        %v2469 = vsel %vm2468, %v2461, %v2465
        %v2470 = vand.u32 2147483647, %v1605
        %vm2471 = vcmp.eq.f32.partialorder %v2470, 8.507059e+37
        %v2472 = vand.u32 %v1605, 2147483648
        %v2473 = vor.u32 1.1754944e-38, %v2472
        %v2474 = vsel %vm2471, %v2473, %v2469
        %v2475 = vrcp.pop %v1606
        %v2476 = vmul.f32 %v1606, %v2475
        %v2477 = vsub.f32 1.0, %v2476
        %v2478 = vmul.f32 %v2475, %v2477
        %v2479 = vadd.f32 %v2475, %v2478
        %vm2480 = vweird.f32 %v1606
        %vm2481 = vweird.f32 %v2475
        %vm2482 = vmor %vm2480, %vm2481
        %v2483 = vsel %vm2482, %v2475, %v2479
        %v2484 = vand.u32 2147483647, %v1606
        %vm2485 = vcmp.eq.f32.partialorder %v2484, 8.507059e+37
        %v2486 = vand.u32 %v1606, 2147483648
        %v2487 = vor.u32 1.1754944e-38, %v2486
        %v2488 = vsel %vm2485, %v2487, %v2483
        %v2489 = vmul.f32 %v158, %v1620
        %v2490 = vmul.f32 %v159, %v1620
        %v2491 = vmul.f32 %v160, %v1620
        %v2492 = vmul.f32 %v161, %v1634
        %v2493 = vmul.f32 %v162, %v1634
        %v2494 = vmul.f32 %v163, %v1634
        %v2495 = vmul.f32 %v164, %v1648
        %v2496 = vmul.f32 %v165, %v1648
        %v2497 = vmul.f32 %v166, %v1648
        %v2498 = vmul.f32 %v167, %v1662
        %v2499 = vmul.f32 %v168, %v1662
        %v2500 = vmul.f32 %v169, %v1662
        %v2501 = vmul.f32 %v170, %v1676
        %v2502 = vmul.f32 %v171, %v1676
        %v2503 = vmul.f32 %v172, %v1676
        %v2504 = vmul.f32 %v173, %v1690
        %v2505 = vmul.f32 %v174, %v1690
        %v2506 = vmul.f32 %v175, %v1690
        %v2507 = vmul.f32 %v176, %v1704
        %v2508 = vmul.f32 %v177, %v1704
        %v2509 = vmul.f32 %v178, %v1704
        %v2510 = vmul.f32 %v179, %v1718
        %v2511 = vmul.f32 %v180, %v1718
        %v2512 = vmul.f32 %v181, %v1718
        %v2513 = vmul.f32 %v182, %v1732
        %v2514 = vmul.f32 %v183, %v1732
        %v2515 = vmul.f32 %v184, %v1732
        %v2516 = vmul.f32 %v185, %v1746
        %v2517 = vmul.f32 %v186, %v1746
        %v2518 = vmul.f32 %v187, %v1746
        %v2519 = vmul.f32 %v188, %v1760
        %v2520 = vmul.f32 %v189, %v1760
        %v2521 = vmul.f32 %v190, %v1760
        %v2522 = vmul.f32 %v191, %v1774
        %v2523 = vmul.f32 %v192, %v1774
        %v2524 = vmul.f32 %v193, %v1774
        %v2525 = vmul.f32 %v194, %v1788
        %v2526 = vmul.f32 %v195, %v1788
        %v2527 = vmul.f32 %v196, %v1788
        %v2528 = vmul.f32 %v197, %v1802
        %v2529 = vmul.f32 %v198, %v1802
        %v2530 = vmul.f32 %v199, %v1802
        %v2531 = vmul.f32 %v200, %v1816
        %v2532 = vmul.f32 %v201, %v1816
        %v2533 = vmul.f32 %v202, %v1816
        %v2534 = vmul.f32 %v203, %v1830
        %v2535 = vmul.f32 %v204, %v1830
        %v2536 = vmul.f32 %v205, %v1830
        %v2537 = vmul.f32 %v206, %v1844
        %v2538 = vmul.f32 %v207, %v1844
        %v2539 = vmul.f32 %v208, %v1844
        %v2540 = vmul.f32 %v209, %v1858
        %v2541 = vmul.f32 %v210, %v1858
        %v2542 = vmul.f32 %v211, %v1858
        %v2543 = vmul.f32 %v212, %v1872
        %v2544 = vmul.f32 %v213, %v1872
        %v2545 = vmul.f32 %v214, %v1872
        %v2546 = vmul.f32 %v215, %v1886
        %v2547 = vmul.f32 %v216, %v1886
        %v2548 = vmul.f32 %v217, %v1886
        %v2549 = vmul.f32 %v218, %v1900
        %v2550 = vmul.f32 %v219, %v1900
        %v2551 = vmul.f32 %v220, %v1900
        %v2552 = vmul.f32 %v221, %v1914
        %v2553 = vmul.f32 %v222, %v1914
        %v2554 = vmul.f32 %v223, %v1914
        %v2555 = vmul.f32 %v224, %v1928
        %v2556 = vmul.f32 %v225, %v1928
        %v2557 = vmul.f32 %v226, %v1928
        %v2558 = vmul.f32 %v227, %v1942
        %v2559 = vmul.f32 %v228, %v1942
        %v2560 = vmul.f32 %v229, %v1942
        %v2561 = vmul.f32 %v230, %v1956
        %v2562 = vmul.f32 %v231, %v1956
        %v2563 = vmul.f32 %v232, %v1956
        %v2564 = vmul.f32 %v233, %v1970
        %v2565 = vmul.f32 %v234, %v1970
        %v2566 = vmul.f32 %v235, %v1970
        %v2567 = vmul.f32 %v236, %v1984
        %v2568 = vmul.f32 %v237, %v1984
        %v2569 = vmul.f32 %v238, %v1984
        %v2570 = vmul.f32 %v239, %v1998
        %v2571 = vmul.f32 %v240, %v1998
        %v2572 = vmul.f32 %v241, %v1998
        %v2573 = vmul.f32 %v242, %v2012
        %v2574 = vmul.f32 %v243, %v2012
        %v2575 = vmul.f32 %v244, %v2012
        %v2576 = vmul.f32 %v245, %v2026
        %v2577 = vmul.f32 %v246, %v2026
        %v2578 = vmul.f32 %v247, %v2026
        %v2579 = vmul.f32 %v248, %v2040
        %v2580 = vmul.f32 %v249, %v2040
        %v2581 = vmul.f32 %v250, %v2040
        %v2582 = vmul.f32 %v251, %v2054
        %v2583 = vmul.f32 %v252, %v2054
        %v2584 = vmul.f32 %v253, %v2054
        %v2585 = vmul.f32 %v254, %v2068
        %v2586 = vmul.f32 %v255, %v2068
        %v2587 = vmul.f32 %v256, %v2068
        %v2588 = vmul.f32 %v257, %v2082
        %v2589 = vmul.f32 %v258, %v2082
        %v2590 = vmul.f32 %v259, %v2082
        %v2591 = vmul.f32 %v260, %v2096
        %v2592 = vmul.f32 %v261, %v2096
        %v2593 = vmul.f32 %v262, %v2096
        %v2594 = vmul.f32 %v263, %v2110
        %v2595 = vmul.f32 %v264, %v2110
        %v2596 = vmul.f32 %v265, %v2110
        %v2597 = vmul.f32 %v266, %v2124
        %v2598 = vmul.f32 %v267, %v2124
        %v2599 = vmul.f32 %v268, %v2124
        %v2600 = vmul.f32 %v269, %v2138
        %v2601 = vmul.f32 %v270, %v2138
        %v2602 = vmul.f32 %v271, %v2138
        %v2603 = vmul.f32 %v272, %v2152
        %v2604 = vmul.f32 %v273, %v2152
        %v2605 = vmul.f32 %v274, %v2152
        %v2606 = vmul.f32 %v275, %v2166
        %v2607 = vmul.f32 %v276, %v2166
        %v2608 = vmul.f32 %v277, %v2166
        %v2609 = vmul.f32 %v278, %v2180
        %v2610 = vmul.f32 %v279, %v2180
        %v2611 = vmul.f32 %v280, %v2180
        %v2612 = vmul.f32 %v281, %v2194
        %v2613 = vmul.f32 %v282, %v2194
        %v2614 = vmul.f32 %v283, %v2194
        %v2615 = vmul.f32 %v284, %v2208
        %v2616 = vmul.f32 %v285, %v2208
        %v2617 = vmul.f32 %v286, %v2208
        %v2618 = vmul.f32 %v287, %v2222
        %v2619 = vmul.f32 %v288, %v2222
        %v2620 = vmul.f32 %v289, %v2222
        %v2621 = vmul.f32 %v290, %v2236
        %v2622 = vmul.f32 %v291, %v2236
        %v2623 = vmul.f32 %v292, %v2236
        %v2624 = vmul.f32 %v293, %v2250
        %v2625 = vmul.f32 %v294, %v2250
        %v2626 = vmul.f32 %v295, %v2250
        %v2627 = vmul.f32 %v296, %v2264
        %v2628 = vmul.f32 %v297, %v2264
        %v2629 = vmul.f32 %v298, %v2264
        %v2630 = vmul.f32 %v299, %v2278
        %v2631 = vmul.f32 %v300, %v2278
        %v2632 = vmul.f32 %v301, %v2278
        %v2633 = vmul.f32 %v302, %v2292
        %v2634 = vmul.f32 %v303, %v2292
        %v2635 = vmul.f32 %v304, %v2292
        %v2636 = vmul.f32 %v305, %v2306
        %v2637 = vmul.f32 %v306, %v2306
        %v2638 = vmul.f32 %v307, %v2306
        %v2639 = vmul.f32 %v308, %v2320
        %v2640 = vmul.f32 %v309, %v2320
        %v2641 = vmul.f32 %v310, %v2320
        %v2642 = vmul.f32 %v311, %v2334
        %v2643 = vmul.f32 %v312, %v2334
        %v2644 = vmul.f32 %v313, %v2334
        %v2645 = vmul.f32 %v314, %v2348
        %v2646 = vmul.f32 %v315, %v2348
        %v2647 = vmul.f32 %v316, %v2348
        %v2648 = vmul.f32 %v317, %v2362
        %v2649 = vmul.f32 %v318, %v2362
        %v2650 = vmul.f32 %v319, %v2362
        %v2651 = vmul.f32 %v320, %v2376
        %v2652 = vmul.f32 %v321, %v2376
        %v2653 = vmul.f32 %v322, %v2376
        %v2654 = vmul.f32 %v323, %v2390
        %v2655 = vmul.f32 %v324, %v2390
        %v2656 = vmul.f32 %v325, %v2390
        %v2657 = vmul.f32 %v326, %v2404
        %v2658 = vmul.f32 %v327, %v2404
        %v2659 = vmul.f32 %v328, %v2404
        %v2660 = vmul.f32 %v329, %v2418
        %v2661 = vmul.f32 %v330, %v2418
        %v2662 = vmul.f32 %v331, %v2418
        %v2663 = vmul.f32 %v332, %v2432
        %v2664 = vmul.f32 %v333, %v2432
        %v2665 = vmul.f32 %v334, %v2432
        %v2666 = vmul.f32 %v335, %v2446
        %v2667 = vmul.f32 %v336, %v2446
        %v2668 = vmul.f32 %v337, %v2446
        %v2669 = vmul.f32 %v338, %v2460
        %v2670 = vmul.f32 %v339, %v2460
        %v2671 = vmul.f32 %v340, %v2460
        %v2672 = vmul.f32 %v341, %v2474
        %v2673 = vmul.f32 %v342, %v2474
        %v2674 = vmul.f32 %v343, %v2474
        %v2675 = vmul.f32 %v344, %v2488
        %v2676 = vmul.f32 %v345, %v2488
        %v2677 = vmul.f32 %v346, %v2488
        %2678 = vst [vmem:[%s145] sm:$0xff] %v2489
        %2679 = vst [vmem:[%s145 + $0x8] sm:$0xff] %v2490
        %2680 = vst [vmem:[%s145 + $0x10] sm:$0xff] %v2491
        %2681 = vst [vmem:[%s145 + $0x18] sm:$0xff] %v2492
        %2682 = vst [vmem:[%s145 + $0x20] sm:$0xff] %v2493
        %2683 = vst [vmem:[%s145 + $0x28] sm:$0xff] %v2494
        %2684 = vst [vmem:[%s145 + $0x30] sm:$0xff] %v2495
        %2685 = vst [vmem:[%s145 + $0x38] sm:$0xff] %v2496
        %2686 = vst [vmem:[%s145 + $0x40] sm:$0xff] %v2497
        %2687 = vst [vmem:[%s145 + $0x48] sm:$0xff] %v2498
        %2688 = vst [vmem:[%s145 + $0x50] sm:$0xff] %v2499
        %2689 = vst [vmem:[%s145 + $0x58] sm:$0xff] %v2500
        %2690 = vst [vmem:[%s145 + $0x60] sm:$0xff] %v2501
        %2691 = vst [vmem:[%s145 + $0x68] sm:$0xff] %v2502
        %2692 = vst [vmem:[%s145 + $0x70] sm:$0xff] %v2503
        %2693 = vst [vmem:[%s145 + $0x78] sm:$0xff] %v2504
        %2694 = vst [vmem:[%s145 + $0x80] sm:$0xff] %v2505
        %2695 = vst [vmem:[%s145 + $0x88] sm:$0xff] %v2506
        %2696 = vst [vmem:[%s145 + $0x90] sm:$0xff] %v2507
        %2697 = vst [vmem:[%s145 + $0x98] sm:$0xff] %v2508
        %2698 = vst [vmem:[%s145 + $0xa0] sm:$0xff] %v2509
        %2699 = vst [vmem:[%s145 + $0xa8] sm:$0xff] %v2510
        %2700 = vst [vmem:[%s145 + $0xb0] sm:$0xff] %v2511
        %2701 = vst [vmem:[%s145 + $0xb8] sm:$0xff] %v2512
        %2702 = vst [vmem:[%s145 + $0xc0] sm:$0xff] %v2513
        %2703 = vst [vmem:[%s145 + $0xc8] sm:$0xff] %v2514
        %2704 = vst [vmem:[%s145 + $0xd0] sm:$0xff] %v2515
        %2705 = vst [vmem:[%s145 + $0xd8] sm:$0xff] %v2516
        %2706 = vst [vmem:[%s145 + $0xe0] sm:$0xff] %v2517
        %2707 = vst [vmem:[%s145 + $0xe8] sm:$0xff] %v2518
        %2708 = vst [vmem:[%s145 + $0xf0] sm:$0xff] %v2519
        %2709 = vst [vmem:[%s145 + $0xf8] sm:$0xff] %v2520
        %2710 = vst [vmem:[%s145 + $0x100] sm:$0xff] %v2521
        %2711 = vst [vmem:[%s145 + $0x108] sm:$0xff] %v2522
        %2712 = vst [vmem:[%s145 + $0x110] sm:$0xff] %v2523
        %2713 = vst [vmem:[%s145 + $0x118] sm:$0xff] %v2524
        %2714 = vst [vmem:[%s145 + $0x120] sm:$0xff] %v2525
        %2715 = vst [vmem:[%s145 + $0x128] sm:$0xff] %v2526
        %2716 = vst [vmem:[%s145 + $0x130] sm:$0xff] %v2527
        %2717 = vst [vmem:[%s145 + $0x138] sm:$0xff] %v2528
        %2718 = vst [vmem:[%s145 + $0x140] sm:$0xff] %v2529
        %2719 = vst [vmem:[%s145 + $0x148] sm:$0xff] %v2530
        %2720 = vst [vmem:[%s145 + $0x150] sm:$0xff] %v2531
        %2721 = vst [vmem:[%s145 + $0x158] sm:$0xff] %v2532
        %2722 = vst [vmem:[%s145 + $0x160] sm:$0xff] %v2533
        %2723 = vst [vmem:[%s145 + $0x168] sm:$0xff] %v2534
        %2724 = vst [vmem:[%s145 + $0x170] sm:$0xff] %v2535
        %2725 = vst [vmem:[%s145 + $0x178] sm:$0xff] %v2536
        %2726 = vst [vmem:[%s145 + $0x180] sm:$0xff] %v2537
        %2727 = vst [vmem:[%s145 + $0x188] sm:$0xff] %v2538
        %2728 = vst [vmem:[%s145 + $0x190] sm:$0xff] %v2539
        %2729 = vst [vmem:[%s145 + $0x198] sm:$0xff] %v2540
        %2730 = vst [vmem:[%s145 + $0x1a0] sm:$0xff] %v2541
        %2731 = vst [vmem:[%s145 + $0x1a8] sm:$0xff] %v2542
        %2732 = vst [vmem:[%s145 + $0x1b0] sm:$0xff] %v2543
        %2733 = vst [vmem:[%s145 + $0x1b8] sm:$0xff] %v2544
        %2734 = vst [vmem:[%s145 + $0x1c0] sm:$0xff] %v2545
        %2735 = vst [vmem:[%s145 + $0x1c8] sm:$0xff] %v2546
        %2736 = vst [vmem:[%s145 + $0x1d0] sm:$0xff] %v2547
        %2737 = vst [vmem:[%s145 + $0x1d8] sm:$0xff] %v2548
        %2738 = vst [vmem:[%s145 + $0x1e0] sm:$0xff] %v2549
        %2739 = vst [vmem:[%s145 + $0x1e8] sm:$0xff] %v2550
        %2740 = vst [vmem:[%s145 + $0x1f0] sm:$0xff] %v2551
        %2741 = vst [vmem:[%s145 + $0x1f8] sm:$0xff] %v2552
        %2742 = vst [vmem:[%s145 + $0x200] sm:$0xff] %v2553
        %2743 = vst [vmem:[%s145 + $0x208] sm:$0xff] %v2554
        %2744 = vst [vmem:[%s145 + $0x210] sm:$0xff] %v2555
        %2745 = vst [vmem:[%s145 + $0x218] sm:$0xff] %v2556
        %2746 = vst [vmem:[%s145 + $0x220] sm:$0xff] %v2557
        %2747 = vst [vmem:[%s145 + $0x228] sm:$0xff] %v2558
        %2748 = vst [vmem:[%s145 + $0x230] sm:$0xff] %v2559
        %2749 = vst [vmem:[%s145 + $0x238] sm:$0xff] %v2560
        %2750 = vst [vmem:[%s145 + $0x240] sm:$0xff] %v2561
        %2751 = vst [vmem:[%s145 + $0x248] sm:$0xff] %v2562
        %2752 = vst [vmem:[%s145 + $0x250] sm:$0xff] %v2563
        %2753 = vst [vmem:[%s145 + $0x258] sm:$0xff] %v2564
        %2754 = vst [vmem:[%s145 + $0x260] sm:$0xff] %v2565
        %2755 = vst [vmem:[%s145 + $0x268] sm:$0xff] %v2566
        %2756 = vst [vmem:[%s145 + $0x270] sm:$0xff] %v2567
        %2757 = vst [vmem:[%s145 + $0x278] sm:$0xff] %v2568
        %2758 = vst [vmem:[%s145 + $0x280] sm:$0xff] %v2569
        %2759 = vst [vmem:[%s145 + $0x288] sm:$0xff] %v2570
        %2760 = vst [vmem:[%s145 + $0x290] sm:$0xff] %v2571
        %2761 = vst [vmem:[%s145 + $0x298] sm:$0xff] %v2572
        %2762 = vst [vmem:[%s145 + $0x2a0] sm:$0xff] %v2573
        %2763 = vst [vmem:[%s145 + $0x2a8] sm:$0xff] %v2574
        %2764 = vst [vmem:[%s145 + $0x2b0] sm:$0xff] %v2575
        %2765 = vst [vmem:[%s145 + $0x2b8] sm:$0xff] %v2576
        %2766 = vst [vmem:[%s145 + $0x2c0] sm:$0xff] %v2577
        %2767 = vst [vmem:[%s145 + $0x2c8] sm:$0xff] %v2578
        %2768 = vst [vmem:[%s145 + $0x2d0] sm:$0xff] %v2579
        %2769 = vst [vmem:[%s145 + $0x2d8] sm:$0xff] %v2580
        %2770 = vst [vmem:[%s145 + $0x2e0] sm:$0xff] %v2581
        %2771 = vst [vmem:[%s145 + $0x2e8] sm:$0xff] %v2582
        %2772 = vst [vmem:[%s145 + $0x2f0] sm:$0xff] %v2583
        %2773 = vst [vmem:[%s145 + $0x2f8] sm:$0xff] %v2584
        %2774 = vst [vmem:[%s145 + $0x300] sm:$0xff] %v2585
        %2775 = vst [vmem:[%s145 + $0x308] sm:$0xff] %v2586
        %2776 = vst [vmem:[%s145 + $0x310] sm:$0xff] %v2587
        %2777 = vst [vmem:[%s145 + $0x318] sm:$0xff] %v2588
        %2778 = vst [vmem:[%s145 + $0x320] sm:$0xff] %v2589
        %2779 = vst [vmem:[%s145 + $0x328] sm:$0xff] %v2590
        %2780 = vst [vmem:[%s145 + $0x330] sm:$0xff] %v2591
        %2781 = vst [vmem:[%s145 + $0x338] sm:$0xff] %v2592
        %2782 = vst [vmem:[%s145 + $0x340] sm:$0xff] %v2593
        %2783 = vst [vmem:[%s145 + $0x348] sm:$0xff] %v2594
        %2784 = vst [vmem:[%s145 + $0x350] sm:$0xff] %v2595
        %2785 = vst [vmem:[%s145 + $0x358] sm:$0xff] %v2596
        %2786 = vst [vmem:[%s145 + $0x360] sm:$0xff] %v2597
        %2787 = vst [vmem:[%s145 + $0x368] sm:$0xff] %v2598
        %2788 = vst [vmem:[%s145 + $0x370] sm:$0xff] %v2599
        %2789 = vst [vmem:[%s145 + $0x378] sm:$0xff] %v2600
        %2790 = vst [vmem:[%s145 + $0x380] sm:$0xff] %v2601
        %2791 = vst [vmem:[%s145 + $0x388] sm:$0xff] %v2602
        %2792 = vst [vmem:[%s145 + $0x390] sm:$0xff] %v2603
        %2793 = vst [vmem:[%s145 + $0x398] sm:$0xff] %v2604
        %2794 = vst [vmem:[%s145 + $0x3a0] sm:$0xff] %v2605
        %2795 = vst [vmem:[%s145 + $0x3a8] sm:$0xff] %v2606
        %2796 = vst [vmem:[%s145 + $0x3b0] sm:$0xff] %v2607
        %2797 = vst [vmem:[%s145 + $0x3b8] sm:$0xff] %v2608
        %2798 = vst [vmem:[%s145 + $0x3c0] sm:$0xff] %v2609
        %2799 = vst [vmem:[%s145 + $0x3c8] sm:$0xff] %v2610
        %2800 = vst [vmem:[%s145 + $0x3d0] sm:$0xff] %v2611
        %2801 = vst [vmem:[%s145 + $0x3d8] sm:$0xff] %v2612
        %2802 = vst [vmem:[%s145 + $0x3e0] sm:$0xff] %v2613
        %2803 = vst [vmem:[%s145 + $0x3e8] sm:$0xff] %v2614
        %2804 = vst [vmem:[%s145 + $0x3f0] sm:$0xff] %v2615
        %2805 = vst [vmem:[%s145 + $0x3f8] sm:$0xff] %v2616
        %2806 = vst [vmem:[%s145 + $0x400] sm:$0xff] %v2617
        %2807 = vst [vmem:[%s145 + $0x408] sm:$0xff] %v2618
        %2808 = vst [vmem:[%s145 + $0x410] sm:$0xff] %v2619
        %2809 = vst [vmem:[%s145 + $0x418] sm:$0xff] %v2620
        %2810 = vst [vmem:[%s145 + $0x420] sm:$0xff] %v2621
        %2811 = vst [vmem:[%s145 + $0x428] sm:$0xff] %v2622
        %2812 = vst [vmem:[%s145 + $0x430] sm:$0xff] %v2623
        %2813 = vst [vmem:[%s145 + $0x438] sm:$0xff] %v2624
        %2814 = vst [vmem:[%s145 + $0x440] sm:$0xff] %v2625
        %2815 = vst [vmem:[%s145 + $0x448] sm:$0xff] %v2626
        %2816 = vst [vmem:[%s145 + $0x450] sm:$0xff] %v2627
        %2817 = vst [vmem:[%s145 + $0x458] sm:$0xff] %v2628
        %2818 = vst [vmem:[%s145 + $0x460] sm:$0xff] %v2629
        %2819 = vst [vmem:[%s145 + $0x468] sm:$0xff] %v2630
        %2820 = vst [vmem:[%s145 + $0x470] sm:$0xff] %v2631
        %2821 = vst [vmem:[%s145 + $0x478] sm:$0xff] %v2632
        %2822 = vst [vmem:[%s145 + $0x480] sm:$0xff] %v2633
        %2823 = vst [vmem:[%s145 + $0x488] sm:$0xff] %v2634
        %2824 = vst [vmem:[%s145 + $0x490] sm:$0xff] %v2635
        %2825 = vst [vmem:[%s145 + $0x498] sm:$0xff] %v2636
        %2826 = vst [vmem:[%s145 + $0x4a0] sm:$0xff] %v2637
        %2827 = vst [vmem:[%s145 + $0x4a8] sm:$0xff] %v2638
        %2828 = vst [vmem:[%s145 + $0x4b0] sm:$0xff] %v2639
        %2829 = vst [vmem:[%s145 + $0x4b8] sm:$0xff] %v2640
        %2830 = vst [vmem:[%s145 + $0x4c0] sm:$0xff] %v2641
        %2831 = vst [vmem:[%s145 + $0x4c8] sm:$0xff] %v2642
        %2832 = vst [vmem:[%s145 + $0x4d0] sm:$0xff] %v2643
        %2833 = vst [vmem:[%s145 + $0x4d8] sm:$0xff] %v2644
        %2834 = vst [vmem:[%s145 + $0x4e0] sm:$0xff] %v2645
        %2835 = vst [vmem:[%s145 + $0x4e8] sm:$0xff] %v2646
        %2836 = vst [vmem:[%s145 + $0x4f0] sm:$0xff] %v2647
        %2837 = vst [vmem:[%s145 + $0x4f8] sm:$0xff] %v2648
        %2838 = vst [vmem:[%s145 + $0x500] sm:$0xff] %v2649
        %2839 = vst [vmem:[%s145 + $0x508] sm:$0xff] %v2650
        %2840 = vst [vmem:[%s145 + $0x510] sm:$0xff] %v2651
        %2841 = vst [vmem:[%s145 + $0x518] sm:$0xff] %v2652
        %2842 = vst [vmem:[%s145 + $0x520] sm:$0xff] %v2653
        %2843 = vst [vmem:[%s145 + $0x528] sm:$0xff] %v2654
        %2844 = vst [vmem:[%s145 + $0x530] sm:$0xff] %v2655
        %2845 = vst [vmem:[%s145 + $0x538] sm:$0xff] %v2656
        %2846 = vst [vmem:[%s145 + $0x540] sm:$0xff] %v2657
        %2847 = vst [vmem:[%s145 + $0x548] sm:$0xff] %v2658
        %2848 = vst [vmem:[%s145 + $0x550] sm:$0xff] %v2659
        %2849 = vst [vmem:[%s145 + $0x558] sm:$0xff] %v2660
        %2850 = vst [vmem:[%s145 + $0x560] sm:$0xff] %v2661
        %2851 = vst [vmem:[%s145 + $0x568] sm:$0xff] %v2662
        %2852 = vst [vmem:[%s145 + $0x570] sm:$0xff] %v2663
        %2853 = vst [vmem:[%s145 + $0x578] sm:$0xff] %v2664
        %2854 = vst [vmem:[%s145 + $0x580] sm:$0xff] %v2665
        %2855 = vst [vmem:[%s145 + $0x588] sm:$0xff] %v2666
        %2856 = vst [vmem:[%s145 + $0x590] sm:$0xff] %v2667
        %2857 = vst [vmem:[%s145 + $0x598] sm:$0xff] %v2668
        %2858 = vst [vmem:[%s145 + $0x5a0] sm:$0xff] %v2669
        %2859 = vst [vmem:[%s145 + $0x5a8] sm:$0xff] %v2670
        %2860 = vst [vmem:[%s145 + $0x5b0] sm:$0xff] %v2671
        %2861 = vst [vmem:[%s145 + $0x5b8] sm:$0xff] %v2672
        %2862 = vst [vmem:[%s145 + $0x5c0] sm:$0xff] %v2673
        %2863 = vst [vmem:[%s145 + $0x5c8] sm:$0xff] %v2674
        %2864 = vst [vmem:[%s145 + $0x5d0] sm:$0xff] %v2675
        %2865 = vst [vmem:[%s145 + $0x5d8] sm:$0xff] %v2676
        %2866 = vst [vmem:[%s145 + $0x5e0] sm:$0xff] %v2677
        %s2867 = sand.u32 %s52, 1
        %s2868 = scalar_lea.sflag [#allocation4], %s2867
        %s2869 = sand.u32 %s52, 1
        %s2870 = smul.addr %s2869, 1512
        %s2871 = scalar_lea.vmem [#allocation5], %s2870
        // Predicated region
        $region29: #{tpu_custom_call.1} parent=23 // pred_check
          %p2872 = pneg %p62
        $region30: #{tpu_custom_call.1} parent=23 // pred_check_branch
          %2874 = sbr.rel (%p2872) target = $region32
        $region31: #{tpu_custom_call.1} parent=23 // pred_region
          %s2875 = smul.u32 63, %s18
          %s2876 = ssub.s32 125, %s2875
          %p2877 = scmp.lt.s32.totalorder %s2876, 63
          %s2878 = scalar_select %p2877, %s2876, 63
          %s2879 = smul.u32 8, %s2878
          %s2880 = smul.u32 %s2879, 3
          %s2881 = ssub.s32 1512, %s2880
          %s2882 = sshll.u32 %s2881, 4
          %2883 = vsyncadd %s2868, %s2882
          %p2884 = scmp.ne.s32.totalorder 0, %s2880
          %s2885 = smul.addr %s2875, 3
          %s2886 = smul.addr %s2885, 8
          %s2887 = scalar_lea.hbm %s1, %s2886
          %s2888 = smul.u32 24, %s2878
          %s2889 = sshll.u32 %s2871, 4
          %s2890 = int_to_ptr.vmem [resolvable:$true] %s2889
          %s2891 = sshll.u32 %s2887, 4
          %s2892 = int_to_ptr.hbm [resolvable:$true] %s2891
          %s2893 = sshll.u32 %s2888, 4
          %2897 = dma.vmem_to_hbm [thread:$0]  (%p2884), %s2890, %s2893, %s2892, %s2868, 384, 384, 24
        $region32: #{tpu_custom_call.1} parent=23 // pred_fallthru
          _
      $region24: #{tpu_custom_call.1} parent=5 // pred_fallthru
        _
      %p2898 = scmp.le.s32.totalorder 2, %s13
      // Predicated region
      $region33: #{tpu_custom_call.1} parent=5 // pred_check
        %p2899 = pneg %p2898
      $region34: #{tpu_custom_call.1} parent=5 // pred_check_branch
        %2901 = sbr.rel (%p2899) target = $region36
      $region35: #{tpu_custom_call.1} parent=5 // pred_region
        %s2902 = ssub.s32 %s13, 2
        // Predicated region
        $region37: #{tpu_custom_call.1} parent=35 // pred_check
          %p2903 = pneg %p68
        $region38: #{tpu_custom_call.1} parent=35 // pred_check_branch
          %2905 = sbr.rel (%p2903) target = $region40
        $region39: #{tpu_custom_call.1} parent=35 // pred_region
          %s2906 = sand.u32 %s53, 1
          %s2907 = scalar_lea.sflag [#allocation4], %s2906
          %s2908 = sand.u32 %s53, 1
          %s2909 = smul.addr %s2908, 1512
          %s2910 = scalar_lea.vmem [#allocation5], %s2909
          %2912 = dma.done %s2907, 24192
        $region40: #{tpu_custom_call.1} parent=35 // pred_fallthru
          _
      $region36: #{tpu_custom_call.1} parent=5 // pred_fallthru
        _
    $region6: #{tpu_custom_call.1} parent=1 // loop_footer
      %s17 = sadd.s32 1, %s13
    $region7: #{tpu_custom_call.1} parent=1 // loop_footer_branch
      %12 = sbr.rel target = $region3
    $region8: #{tpu_custom_call.1} parent=1 // loop_exit
      _
    %2913 = vsyncpa [#allocation3], 1
    %s2914 = scalar_lea.sflag [#allocation3], 1
    %2915 = vsyncpa %s2914, 1
    %2916 = vsyncpa [#allocation4], 1
    %s2917 = scalar_lea.sflag [#allocation4], 1
    %2918 = vsyncpa %s2917, 1

</llo_original>
